<compile_context>
chip_gen: v5e
topology: v5e:2x2
jax: 0.10.0
libtpu: 0.0.40
codegen_flags: <defaults>
</compile_context>

<pallas_src>
import functools

import jax
import jax.numpy as jnp
from jax import lax
from jax.experimental import pallas as pl
from jax.experimental.pallas import tpu as pltpu

_VMEM_LIMIT_BYTES = 48 * 1024 * 1024   # safe on v5e/v6e (128 MiB) and v7x (64 MiB physical)
_NEG_INF = -1e30                       # finite "minus infinity" for online-softmax init


# ----------------------------- spec helpers -----------------------------

def _const_map(ndim, grid_rank):
    if grid_rank == 2:
        return lambda b, q: (0,) * ndim
    return lambda b, q, k: (0,) * ndim


def _weight_spec(shape, grid_rank):
    """Constant-index weight BlockSpec; single-buffered (weights are grid-invariant)."""
    idx = _const_map(len(shape), grid_rank)
    try:
        return pl.BlockSpec(shape, idx, pipeline_mode=pl.Buffered(1))
    except TypeError:  # older Pallas without pipeline_mode: keep default buffering
        return pl.BlockSpec(shape, idx)


# ----------------------------- in-kernel helpers -----------------------------

def _layer_norm(x, eps, weight=None, bias=None):
    # Two-pass statistics: avoids catastrophic cancellation of E[x^2]-E[x]^2 on
    # post-residual activations with large means.
    mu = jnp.mean(x, axis=-1, keepdims=True)
    xc = x - mu
    var = jnp.mean(xc * xc, axis=-1, keepdims=True)
    y = xc * lax.rsqrt(var + eps)
    if weight is not None:
        y = y * weight + bias
    return y


def _gelu_exact(x):
    # nn.GELU(approximate="none") — matches the PyTorch FeedForward default.
    return 0.5 * x * (1.0 + lax.erf(x * (1.0 / jnp.sqrt(2.0))))


def _flash_update(q, k, v, heads, head_dim, m_ref, l_ref, acc_ref):
    """Online-softmax update for one K/V block.

    q/k/v : bf16 [TQ, H*Dh] / [TK, H*Dh] / [TK, H*Dh]; 1/sqrt(Dh) already folded into q.
    m_ref/l_ref : [H, TQ, 1] f32 scratch; acc_ref : [TQ, H*Dh] f32 scratch.
    Static Python loop over heads (heads is small & static; static lane slices keep the
    head addressing aligned and each head's [TQ, TK] score block is dead after its store).
    """
    for h in range(heads):
        sl = slice(h * head_dim, (h + 1) * head_dim)
        s = lax.dot_general(q[:, sl], k[:, sl],
                            dimension_numbers=(((1,), (1,)), ((), ())),
                            preferred_element_type=jnp.float32)           # [TQ, TK]
        m_prev = m_ref[h]                                                 # [TQ, 1]
        m_new = jnp.maximum(m_prev, jnp.max(s, axis=-1, keepdims=True))
        alpha = jnp.exp(m_prev - m_new)
        p = jnp.exp(s - m_new)
        l_ref[h] = alpha * l_ref[h] + jnp.sum(p, axis=-1, keepdims=True)
        acc_ref[:, sl] = alpha * acc_ref[:, sl] + jnp.dot(
            p.astype(jnp.bfloat16), v[:, sl], preferred_element_type=jnp.float32)
        m_ref[h] = m_new


def _flash_finalize(l_ref, acc_ref, heads, head_dim):
    """Per-head softmax normalization; returns the lane-dense [TQ, H*Dh] attention output."""
    for h in range(heads):
        sl = slice(h * head_dim, (h + 1) * head_dim)
        inv = pl.reciprocal(l_ref[h], approx=True)                        # EUP slot
        acc_ref[:, sl] = acc_ref[:, sl] * inv
    return acc_ref[...]


# --------------------------- pass 1: projection kernel ---------------------------

def _proj_kernel(x_ref, pros_ref, emb_ref,
                 qkv_w, qkv_b, mq_w, mq_b, mkv_w, mkv_b,
                 q_out, kv_out, mq_out, mkv_out, *, inner):
    bf16, f32 = jnp.bfloat16, jnp.float32
    x = x_ref[...]          # [TQ, D]
    pros = pros_ref[...]    # [TQ, D]
    emb = emb_ref[...]      # [6, D]
    shift_msa, scale_msa = emb[0:1, :], emb[1:2, :]

    # AdaLayerNormZero modulation (eps=1e-6, no affine) feeding the self-attention QKV.
    norm = _layer_norm(x, 1e-6) * (1.0 + scale_msa) + shift_msa
    qkv = jnp.dot(norm.astype(bf16), qkv_w[...], preferred_element_type=f32) + qkv_b[...]
    q_out[...] = qkv[:, :inner].astype(bf16)
    kv_out[...] = qkv[:, inner:].astype(bf16)

    # Cross-attention projections: query from x, fused K/V from the prosody encoding.
    mq = jnp.dot(x.astype(bf16), mq_w[...], preferred_element_type=f32) + mq_b[...]
    mq_out[...] = mq.astype(bf16)
    mkv = jnp.dot(pros.astype(bf16), mkv_w[...], preferred_element_type=f32) + mkv_b[...]
    mkv_out[...] = mkv.astype(bf16)


# ---------------------- pass 2: flash attention + gate + FF ----------------------

def _attn_ff_kernel(x_ref, emb_ref, q_ref, mq_ref, kv_ref, mkv_ref,
                    ow, mow, pgw, ff1w, ff1b, ff2w, vecs,
                    out_ref,
                    m1, l1, acc1, m2, l2, acc2,
                    *, dim, inner, heads, dim_head):
    bf16, f32 = jnp.bfloat16, jnp.float32
    nk = pl.program_id(2)
    mh_dim = dim // heads

    @pl.when(nk == 0)
    def _init():
        m1[...] = jnp.full(m1.shape, _NEG_INF, f32)
        l1[...] = jnp.zeros(l1.shape, f32)
        acc1[...] = jnp.zeros(acc1.shape, f32)
        m2[...] = jnp.full(m2.shape, _NEG_INF, f32)
        l2[...] = jnp.zeros(l2.shape, f32)
        acc2[...] = jnp.zeros(acc2.shape, f32)

    # --- streamed self-attention update for this K/V block ---
    kv = kv_ref[...]                                   # bf16 [TK, 2*inner]
    _flash_update(q_ref[...], kv[:, :inner], kv[:, inner:], heads, dim_head, m1, l1, acc1)

    # --- streamed prosody cross-attention update for this K/V block ---
    mkv = mkv_ref[...]                                 # bf16 [TK, 2*D]
    _flash_update(mq_ref[...], mkv[:, :dim], mkv[:, dim:], heads, mh_dim, m2, l2, acc2)

    @pl.when(nk == pl.num_programs(2) - 1)
    def _finalize():
        x = x_ref[...]                                 # [TQ, D] f32
        emb = emb_ref[...]                             # [6, D]
        gate_msa, shift_mlp = emb[2:3, :], emb[3:4, :]
        scale_mlp, gate_mlp = emb[4:5, :], emb[5:6, :]
        vec = vecs[...]                                # [8, D] packed bias / LN rows
        ob, mob = vec[0:1, :], vec[1:2, :]
        pgln_w, pgln_b, pgb = vec[2:3, :], vec[3:4, :], vec[4:5, :]
        ffln_w, ffln_b, ff2b = vec[5:6, :], vec[6:7, :], vec[7:8, :]

        # ONE fused [TQ, inner] @ [inner, D] output projection per attention
        # (full-K MXU feed instead of per-head K=Dh accumulation).
        o1 = _flash_finalize(l1, acc1, heads, dim_head)
        attn_out = jnp.dot(o1.astype(bf16), ow[...], preferred_element_type=f32) + ob

        o2 = _flash_finalize(l2, acc2, heads, mh_dim)
        pros_out = jnp.dot(o2.astype(bf16), mow[...], preferred_element_type=f32) + mob

        # prosody gate: Sigmoid(Linear(LayerNorm(pros_out)))
        g = _layer_norm(pros_out, 1e-5, pgln_w, pgln_b)
        pros_gate = jax.nn.sigmoid(
            jnp.dot(g.astype(bf16), pgw[...], preferred_element_type=f32) + pgb)

        # first gated residual
        x1 = x + gate_msa * attn_out + pros_gate * pros_out

        # ff_norm (+ AdaLN shift/scale), FeedForward, second gated residual -- same TQ tile
        norm2 = _layer_norm(x1, 1e-5, ffln_w, ffln_b) * (1.0 + scale_mlp) + shift_mlp
        h1 = jnp.dot(norm2.astype(bf16), ff1w[...], preferred_element_type=f32) + ff1b[...]
        h1 = _gelu_exact(h1)
        ff_out = jnp.dot(h1.astype(bf16), ff2w[...], preferred_element_type=f32) + ff2b

        out_ref[...] = x1 + gate_mlp * ff_out


# -------------------------------- host-side wrapper -------------------------------

def _prepare_weights(params, *, dim, heads, dim_head):
    """Fuse / pre-scale / cast weights host-side (done once; XLA const-folds under jit)."""
    f32, bf16 = jnp.float32, jnp.bfloat16
    q_scale = 1.0 / (dim_head ** 0.5)          # self-attention head dim
    m_scale = 1.0 / ((dim // heads) ** 0.5)    # nn.MultiheadAttention head dim

    # fused self-attention QKV (scale folded into the q columns / bias)
    qkv_w = jnp.concatenate(
        [params["qw"] * q_scale, params["kw"], params["vw"]], axis=1).astype(bf16)
    qkv_b = jnp.concatenate(
        [params["qb"] * q_scale, params["kb"], params["vb"]], axis=1).astype(f32)
    # cross-attention: q separate (different LHS), k/v fused
    mq_w = (params["mqw"] * m_scale).astype(bf16)
    mq_b = (params["mqb"] * m_scale).astype(f32)
    mkv_w = jnp.concatenate([params["mkw"], params["mvw"]], axis=1).astype(bf16)
    mkv_b = jnp.concatenate([params["mkb"], params["mvb"]], axis=1).astype(f32)
    proj_weights = [qkv_w, qkv_b, mq_w, mq_b, mkv_w, mkv_b]

    # All D-wide bias / LayerNorm rows packed into one [8, D] tensor (one DMA, one buffer).
    vecs = jnp.concatenate(
        [params["ob"], params["mob"],
         params["pgln_w"], params["pgln_b"], params["pgb"],
         params["ffln_w"], params["ffln_b"], params["ff2b"]], axis=0).astype(f32)

    attn_weights = [params["ow"].astype(bf16), params["mow"].astype(bf16),
                    params["pgw"].astype(bf16),
                    params["ff1w"].astype(bf16), params["ff1b"].astype(f32),
                    params["ff2w"].astype(bf16), vecs]
    return proj_weights, attn_weights


def prosody_block_forward(x, t, prosody, params, *, heads, dim_head,
                          tile_q=None, tile_k=None):
    """x: [B, N, D], t: [B, D], prosody: [B, N, D] -> [B, N, D]."""
    B, N, D = x.shape
    inner = heads * dim_head
    ff_inner = params["ff1w"].shape[1]
    assert D % heads == 0

    tq = tile_q if tile_q is not None else min(N, 256)
    tk = tile_k if tile_k is not None else min(N, 512)
    assert N % tq == 0 and N % tk == 0, "N must be divisible by the query/key tiles"
    nq, nkt = N // tq, N // tk

    # AdaLayerNormZero time-embedding projection (M=1 GEMM over the biggest weight) in XLA.
    t_silu = t * jax.nn.sigmoid(t)
    emb = (t_silu @ params["ada_w"] + params["ada_b"]).reshape(B, 6, D).astype(jnp.float32)

    proj_w, attn_w = _prepare_weights(params, dim=D, heads=heads, dim_head=dim_head)

    # ---------------- pass 1: row-wise projections ----------------
    proj_data_specs = [
        pl.BlockSpec((None, tq, D), lambda b, q: (b, q, 0)),   # x
        pl.BlockSpec((None, tq, D), lambda b, q: (b, q, 0)),   # prosody_encoding
        pl.BlockSpec((None, 6, D), lambda b, q: (b, 0, 0)),    # AdaLN modulation
    ]
    proj_w_specs = [_weight_spec(tuple(w.shape), 2) for w in proj_w]
    proj_out_specs = (
        pl.BlockSpec((None, tq, inner), lambda b, q: (b, q, 0)),
        pl.BlockSpec((None, tq, 2 * inner), lambda b, q: (b, q, 0)),
        pl.BlockSpec((None, tq, D), lambda b, q: (b, q, 0)),
        pl.BlockSpec((None, tq, 2 * D), lambda b, q: (b, q, 0)),
    )
    proj_out_shapes = (
        jax.ShapeDtypeStruct((B, N, inner), jnp.bfloat16),
        jax.ShapeDtypeStruct((B, N, 2 * inner), jnp.bfloat16),
        jax.ShapeDtypeStruct((B, N, D), jnp.bfloat16),
        jax.ShapeDtypeStruct((B, N, 2 * D), jnp.bfloat16),
    )
    proj_cost = pl.CostEstimate(
        flops=int(2 * B * N * D * (3 * inner + 3 * D)),
        transcendentals=0,
        bytes_accessed=int(2 * B * N * D * 4 + B * 6 * D * 4
                           + sum(int(w.size) * w.dtype.itemsize for w in proj_w)
                           + B * N * (3 * inner + 3 * D) * 2))

    q_all, kv_all, mq_all, mkv_all = pl.pallas_call(
        functools.partial(_proj_kernel, inner=inner),
        out_shape=proj_out_shapes,
        grid_spec=pltpu.PrefetchScalarGridSpec(
            num_scalar_prefetch=0,
            grid=(B, nq),
            in_specs=proj_data_specs + proj_w_specs,
            out_specs=proj_out_specs),
        compiler_params=pltpu.CompilerParams(
            dimension_semantics=("parallel", "parallel"),
            vmem_limit_bytes=_VMEM_LIMIT_BYTES),
        cost_estimate=proj_cost,
    )(x, prosody, emb, *proj_w)

    # -------- pass 2: flash attentions + prosody gate + FeedForward --------
    attn_data_specs = [
        pl.BlockSpec((None, tq, D), lambda b, q, k: (b, q, 0)),          # x
        pl.BlockSpec((None, 6, D), lambda b, q, k: (b, 0, 0)),           # modulation
        pl.BlockSpec((None, tq, inner), lambda b, q, k: (b, q, 0)),      # self-attn q
        pl.BlockSpec((None, tq, D), lambda b, q, k: (b, q, 0)),          # cross-attn q
        pl.BlockSpec((None, tk, 2 * inner), lambda b, q, k: (b, k, 0)),  # self-attn k/v
        pl.BlockSpec((None, tk, 2 * D), lambda b, q, k: (b, k, 0)),      # cross-attn k/v
    ]
    attn_w_specs = [_weight_spec(tuple(w.shape), 3) for w in attn_w]
    attn_cost = pl.CostEstimate(
        flops=int(4 * B * N * N * (inner + D)
                  + 2 * B * N * (inner * D + 3 * D * D + 2 * D * ff_inner)),
        transcendentals=int(2 * B * N * N + B * N * (ff_inner + D)),
        bytes_accessed=int(B * N * (D * 4 + (inner + D) * 2) + B * 6 * D * 4
                           + nq * B * N * (2 * inner + 2 * D) * 2
                           + sum(int(w.size) * w.dtype.itemsize for w in attn_w)
                           + B * N * D * 4))

    out = pl.pallas_call(
        functools.partial(_attn_ff_kernel, dim=D, inner=inner, heads=heads,
                          dim_head=dim_head),
        out_shape=jax.ShapeDtypeStruct((B, N, D), jnp.float32),
        grid_spec=pltpu.PrefetchScalarGridSpec(
            num_scalar_prefetch=0,
            grid=(B, nq, nkt),
            in_specs=attn_data_specs + attn_w_specs,
            out_specs=pl.BlockSpec((None, tq, D), lambda b, q, k: (b, q, 0)),
            scratch_shapes=[
                pltpu.VMEM((heads, tq, 1), jnp.float32),   # m  (self)
                pltpu.VMEM((heads, tq, 1), jnp.float32),   # l  (self)
                pltpu.VMEM((tq, inner), jnp.float32),      # acc (self)
                pltpu.VMEM((heads, tq, 1), jnp.float32),   # m  (cross)
                pltpu.VMEM((heads, tq, 1), jnp.float32),   # l  (cross)
                pltpu.VMEM((tq, D), jnp.float32),          # acc (cross)
            ]),
        compiler_params=pltpu.CompilerParams(
            dimension_semantics=("parallel", "parallel", "arbitrary"),
            vmem_limit_bytes=_VMEM_LIMIT_BYTES),
        cost_estimate=attn_cost,
    )(x, emb, q_all, mq_all, kv_all, mkv_all, *attn_w)
    return out


# -------------------------- deterministic param init --------------------------

def init_params(key, dim, heads, dim_head, ff_mult):
    inner = heads * dim_head
    ff_inner = dim * ff_mult
    ks = iter(jax.random.split(key, 32))
    s = 0.05

    def w(shape):
        return jax.random.normal(next(ks), shape, jnp.float32) * s

    return {
        # AdaLayerNormZero.linear: nn.Linear(dim, 6*dim)  (stored transposed: [in, out])
        "ada_w": w((dim, 6 * dim)), "ada_b": w((1, 6 * dim)),
        # Attention: to_q/to_k/to_v: Linear(dim, inner); to_out[0]: Linear(inner, dim)
        "qw": w((dim, inner)), "qb": w((1, inner)),
        "kw": w((dim, inner)), "kb": w((1, inner)),
        "vw": w((dim, inner)), "vb": w((1, inner)),
        "ow": w((inner, dim)), "ob": w((1, dim)),
        # nn.MultiheadAttention: in_proj (split into q/k/v), out_proj
        "mqw": w((dim, dim)), "mqb": w((1, dim)),
        "mkw": w((dim, dim)), "mkb": w((1, dim)),
        "mvw": w((dim, dim)), "mvb": w((1, dim)),
        "mow": w((dim, dim)), "mob": w((1, dim)),
        # prosody_gate: LayerNorm(dim) -> Linear(dim, dim) -> Sigmoid
        "pgln_w": jnp.ones((1, dim), jnp.float32), "pgln_b": w((1, dim)),
        "pgw": w((dim, dim)), "pgb": w((1, dim)),
        # ff_norm: LayerNorm(dim)
        "ffln_w": jnp.ones((1, dim), jnp.float32), "ffln_b": w((1, dim)),
        # FeedForward: Linear(dim, ff_inner) -> GELU -> Linear(ff_inner, dim)
        "ff1w": w((dim, ff_inner)), "ff1b": w((1, ff_inner)),
        "ff2w": w((ff_inner, dim)), "ff2b": w((1, dim)),
    }


# ------------------------------ pure-JAX reference -----------------------------

def _ref_ln(x, eps, w=None, b=None):
    mu = jnp.mean(x, axis=-1, keepdims=True)
    var = jnp.mean((x - mu) ** 2, axis=-1, keepdims=True)
    y = (x - mu) / jnp.sqrt(var + eps)
    return y if w is None else y * w + b


def _ref_mha(q, k, v, heads):
    B, N, ID = q.shape
    Dh = ID // heads
    M = k.shape[1]
    q = q.reshape(B, N, heads, Dh).transpose(0, 2, 1, 3)
    k = k.reshape(B, M, heads, Dh).transpose(0, 2, 1, 3)
    v = v.reshape(B, M, heads, Dh).transpose(0, 2, 1, 3)
    s = jnp.einsum("bhnd,bhmd->bhnm", q, k) / jnp.sqrt(jnp.float32(Dh))
    p = jax.nn.softmax(s, axis=-1)
    o = jnp.einsum("bhnm,bhmd->bhnd", p, v)
    return o.transpose(0, 2, 1, 3).reshape(B, N, ID)


def reference_forward(x, t, prosody, p, *, heads, dim_head):
    t_silu = t * jax.nn.sigmoid(t)
    emb = t_silu @ p["ada_w"] + p["ada_b"]
    shift_msa, scale_msa, gate_msa, shift_mlp, scale_mlp, gate_mlp = jnp.split(emb, 6, axis=1)

    norm = _ref_ln(x, 1e-6) * (1.0 + scale_msa[:, None]) + shift_msa[:, None]
    q = norm @ p["qw"] + p["qb"]
    k = norm @ p["kw"] + p["kb"]
    v = norm @ p["vw"] + p["vb"]
    attn_out = _ref_mha(q, k, v, heads) @ p["ow"] + p["ob"]

    mq = x @ p["mqw"] + p["mqb"]
    mk = prosody @ p["mkw"] + p["mkb"]
    mv = prosody @ p["mvw"] + p["mvb"]
    pros_out = _ref_mha(mq, mk, mv, heads) @ p["mow"] + p["mob"]

    gate = jax.nn.sigmoid(_ref_ln(pros_out, 1e-5, p["pgln_w"], p["pgln_b"]) @ p["pgw"] + p["pgb"])

    x1 = x + gate_msa[:, None] * attn_out + gate * pros_out
    norm2 = _ref_ln(x1, 1e-5, p["ffln_w"], p["ffln_b"]) * (1.0 + scale_mlp[:, None]) + shift_mlp[:, None]
    h1 = norm2 @ p["ff1w"] + p["ff1b"]
    h1 = 0.5 * h1 * (1.0 + jax.lax.erf(h1 / jnp.sqrt(2.0)))
    ff_out = h1 @ p["ff2w"] + p["ff2b"]
    return x1 + gate_mlp[:, None] * ff_out


# ----------------------------------- main --------------------------------------

if __name__ == "__main__":
    # Small shapes, but chosen so that BOTH grid tiling paths are exercised:
    # N=64 with tile_q=tile_k=32 -> 2 query tiles and 2 streamed K/V blocks per query tile.
    B, N, D = 2, 64, 64
    heads, dim_head, ff_mult = 4, 16, 4

    key = jax.random.PRNGKey(0)
    kx, kt, kp, kw = jax.random.split(key, 4)
    x = jax.random.normal(kx, (B, N, D), jnp.float32)
    t = jax.random.normal(kt, (B, D), jnp.float32)
    prosody = jax.random.normal(kp, (B, N, D), jnp.float32)
    params = init_params(kw, D, heads, dim_head, ff_mult)

    out = prosody_block_forward(x, t, prosody, params, heads=heads, dim_head=dim_head,
                                tile_q=32, tile_k=32)
    out = jax.block_until_ready(out)

    ref = reference_forward(x, t, prosody, params, heads=heads, dim_head=dim_head)
    assert out.shape == (B, N, D)
    max_err = float(jnp.max(jnp.abs(out - ref)))
    # bf16 matmul operands / bf16-stored q,k,v (f32 accumulation) vs. the pure-f32 reference
    assert jnp.allclose(out, ref, atol=2e-2, rtol=2e-2), max_err

    print("KERNEL_OK")
</pallas_src>

<mosaic_0001>
module attributes {stable_mosaic.version = 11 : i64} {
  func.func @_proj_kernel(%arg0: i32, %arg1: i32, %arg2: memref<1x32x64xf32, #tpu.memory_space<vmem>>, %arg3: memref<1x32x64xf32, #tpu.memory_space<vmem>>, %arg4: memref<1x6x64xf32, #tpu.memory_space<vmem>>, %arg5: memref<64x192xbf16, #tpu.memory_space<vmem>>, %arg6: memref<1x192xf32, #tpu.memory_space<vmem>>, %arg7: memref<64x64xbf16, #tpu.memory_space<vmem>>, %arg8: memref<1x64xf32, #tpu.memory_space<vmem>>, %arg9: memref<64x128xbf16, #tpu.memory_space<vmem>>, %arg10: memref<1x128xf32, #tpu.memory_space<vmem>>, %arg11: memref<1x32x64xbf16, #tpu.memory_space<vmem>>, %arg12: memref<1x32x128xbf16, #tpu.memory_space<vmem>>, %arg13: memref<1x32x64xbf16, #tpu.memory_space<vmem>>, %arg14: memref<1x32x128xbf16, #tpu.memory_space<vmem>>) attributes {dimension_semantics = [#tpu.dimension_semantics<parallel>, #tpu.dimension_semantics<parallel>], iteration_bounds = array<i64: 2, 2>, scalar_prefetch = 0 : i64, scratch_operands = 0 : i64, tpu.core_type = #tpu.core_type<tc>, window_params = [{transform_indices = @transform_0, window_bounds = array<i64: 1, 32, 64>}, {transform_indices = @transform_1, window_bounds = array<i64: 1, 32, 64>}, {transform_indices = @transform_2, window_bounds = array<i64: 1, 6, 64>}, {pipeline_mode = #tpu.pipeline_mode<synchronous>, transform_indices = @transform_3, window_bounds = array<i64: 64, 192>}, {pipeline_mode = #tpu.pipeline_mode<synchronous>, transform_indices = @transform_4, window_bounds = array<i64: 1, 192>}, {pipeline_mode = #tpu.pipeline_mode<synchronous>, transform_indices = @transform_5, window_bounds = array<i64: 64, 64>}, {pipeline_mode = #tpu.pipeline_mode<synchronous>, transform_indices = @transform_6, window_bounds = array<i64: 1, 64>}, {pipeline_mode = #tpu.pipeline_mode<synchronous>, transform_indices = @transform_7, window_bounds = array<i64: 64, 128>}, {pipeline_mode = #tpu.pipeline_mode<synchronous>, transform_indices = @transform_8, window_bounds = array<i64: 1, 128>}, {transform_indices = @transform_9, window_bounds = array<i64: 1, 32, 64>}, {transform_indices = @transform_10, window_bounds = array<i64: 1, 32, 128>}, {transform_indices = @transform_11, window_bounds = array<i64: 1, 32, 64>}, {transform_indices = @transform_12, window_bounds = array<i64: 1, 32, 128>}]} {
    %c0 = arith.constant 0 : index
    %c0_0 = arith.constant 0 : index
    %c0_1 = arith.constant 0 : index
    %0 = vector.load %arg2[%c0, %c0_0, %c0_1] : memref<1x32x64xf32, #tpu.memory_space<vmem>>, vector<1x32x64xf32>
    %1 = vector.shape_cast %0 : vector<1x32x64xf32> to vector<32x64xf32>
    %c0_2 = arith.constant 0 : index
    %c0_3 = arith.constant 0 : index
    %c0_4 = arith.constant 0 : index
    %2 = vector.load %arg3[%c0_2, %c0_3, %c0_4] : memref<1x32x64xf32, #tpu.memory_space<vmem>>, vector<1x32x64xf32>
    %3 = vector.shape_cast %2 : vector<1x32x64xf32> to vector<32x64xf32>
    %c0_5 = arith.constant 0 : index
    %c0_6 = arith.constant 0 : index
    %c0_7 = arith.constant 0 : index
    %4 = vector.load %arg4[%c0_5, %c0_6, %c0_7] : memref<1x6x64xf32, #tpu.memory_space<vmem>>, vector<1x6x64xf32>
    %5 = vector.shape_cast %4 : vector<1x6x64xf32> to vector<6x64xf32>
    %6 = vector.extract_strided_slice %5 {offsets = [0, 0], sizes = [1, 64], strides = [1, 1]} : vector<6x64xf32> to vector<1x64xf32>
    %7 = vector.extract_strided_slice %5 {offsets = [1, 0], sizes = [1, 64], strides = [1, 1]} : vector<6x64xf32> to vector<1x64xf32>
    %cst = arith.constant dense<0.000000e+00> : vector<32xf32>
    %8 = vector.multi_reduction <add>, %1, %cst [1] : vector<32x64xf32> to vector<32xf32>
    %9 = vector.shape_cast %8 : vector<32xf32> to vector<32x1xf32>
    %cst_8 = arith.constant 6.400000e+01 : f32
    %10 = vector.broadcast %cst_8 : f32 to vector<32x1xf32>
    %11 = arith.divf %9, %10 : vector<32x1xf32>
    %12 = vector.broadcast %11 : vector<32x1xf32> to vector<32x64xf32>
    %13 = arith.subf %1, %12 : vector<32x64xf32>
    %14 = arith.mulf %13, %13 : vector<32x64xf32>
    %cst_9 = arith.constant dense<0.000000e+00> : vector<32xf32>
    %15 = vector.multi_reduction <add>, %14, %cst_9 [1] : vector<32x64xf32> to vector<32xf32>
    %16 = vector.shape_cast %15 : vector<32xf32> to vector<32x1xf32>
    %cst_10 = arith.constant 6.400000e+01 : f32
    %17 = vector.broadcast %cst_10 : f32 to vector<32x1xf32>
    %18 = arith.divf %16, %17 : vector<32x1xf32>
    %cst_11 = arith.constant 9.99999997E-7 : f32
    %19 = vector.broadcast %cst_11 : f32 to vector<32x1xf32>
    %20 = arith.addf %18, %19 : vector<32x1xf32>
    %21 = math.rsqrt %20 : vector<32x1xf32>
    %22 = vector.broadcast %21 : vector<32x1xf32> to vector<32x64xf32>
    %23 = arith.mulf %13, %22 : vector<32x64xf32>
    %cst_12 = arith.constant 1.000000e+00 : f32
    %24 = vector.broadcast %cst_12 : f32 to vector<1x64xf32>
    %25 = arith.addf %24, %7 : vector<1x64xf32>
    %26 = vector.broadcast %25 : vector<1x64xf32> to vector<32x64xf32>
    %27 = arith.mulf %23, %26 : vector<32x64xf32>
    %28 = vector.broadcast %6 : vector<1x64xf32> to vector<32x64xf32>
    %29 = arith.addf %27, %28 : vector<32x64xf32>
    %30 = arith.truncf %29 : vector<32x64xf32> to vector<32x64xbf16>
    %c0_13 = arith.constant 0 : index
    %c0_14 = arith.constant 0 : index
    %31 = vector.load %arg5[%c0_13, %c0_14] : memref<64x192xbf16, #tpu.memory_space<vmem>>, vector<64x192xbf16>
    %cst_15 = arith.constant dense<0.000000e+00> : vector<32x192xf32>
    %32 = tpu.matmul %30, %31, %cst_15 {dimension_numbers = #tpu.dot_dimension_numbers<[1], [0], [0], [1], [0, 0, 1, 1], [], []>} : vector<32x64xbf16>, vector<64x192xbf16>, vector<32x192xf32> -> vector<32x192xf32>
    %c0_16 = arith.constant 0 : index
    %c0_17 = arith.constant 0 : index
    %33 = vector.load %arg6[%c0_16, %c0_17] : memref<1x192xf32, #tpu.memory_space<vmem>>, vector<1x192xf32>
    %34 = vector.broadcast %33 : vector<1x192xf32> to vector<32x192xf32>
    %35 = arith.addf %32, %34 : vector<32x192xf32>
    %36 = vector.extract_strided_slice %35 {offsets = [0, 0], sizes = [32, 64], strides = [1, 1]} : vector<32x192xf32> to vector<32x64xf32>
    %37 = arith.truncf %36 : vector<32x64xf32> to vector<32x64xbf16>
    %c0_18 = arith.constant 0 : index
    %c0_19 = arith.constant 0 : index
    %c0_20 = arith.constant 0 : index
    %38 = vector.load %arg11[%c0_18, %c0_19, %c0_20] : memref<1x32x64xbf16, #tpu.memory_space<vmem>>, vector<1x32x64xbf16>
    %39 = vector.shape_cast %38 : vector<1x32x64xbf16> to vector<32x64xbf16>
    %40 = vector.shape_cast %37 : vector<32x64xbf16> to vector<1x32x64xbf16>
    tpu.vector_store %arg11[%c0_18, %c0_19, %c0_20], %40 {strides = array<i32>} : memref<1x32x64xbf16, #tpu.memory_space<vmem>>, vector<1x32x64xbf16>,
    %41 = vector.extract_strided_slice %35 {offsets = [0, 64], sizes = [32, 128], strides = [1, 1]} : vector<32x192xf32> to vector<32x128xf32>
    %42 = arith.truncf %41 : vector<32x128xf32> to vector<32x128xbf16>
    %c0_21 = arith.constant 0 : index
    %c0_22 = arith.constant 0 : index
    %c0_23 = arith.constant 0 : index
    %43 = vector.load %arg12[%c0_21, %c0_22, %c0_23] : memref<1x32x128xbf16, #tpu.memory_space<vmem>>, vector<1x32x128xbf16>
    %44 = vector.shape_cast %43 : vector<1x32x128xbf16> to vector<32x128xbf16>
    %45 = vector.shape_cast %42 : vector<32x128xbf16> to vector<1x32x128xbf16>
    tpu.vector_store %arg12[%c0_21, %c0_22, %c0_23], %45 {strides = array<i32>} : memref<1x32x128xbf16, #tpu.memory_space<vmem>>, vector<1x32x128xbf16>,
    %46 = arith.truncf %1 : vector<32x64xf32> to vector<32x64xbf16>
    %c0_24 = arith.constant 0 : index
    %c0_25 = arith.constant 0 : index
    %47 = vector.load %arg7[%c0_24, %c0_25] : memref<64x64xbf16, #tpu.memory_space<vmem>>, vector<64x64xbf16>
    %cst_26 = arith.constant dense<0.000000e+00> : vector<32x64xf32>
    %48 = tpu.matmul %46, %47, %cst_26 {dimension_numbers = #tpu.dot_dimension_numbers<[1], [0], [0], [1], [0, 0, 1, 1], [], []>} : vector<32x64xbf16>, vector<64x64xbf16>, vector<32x64xf32> -> vector<32x64xf32>
    %c0_27 = arith.constant 0 : index
    %c0_28 = arith.constant 0 : index
    %49 = vector.load %arg8[%c0_27, %c0_28] : memref<1x64xf32, #tpu.memory_space<vmem>>, vector<1x64xf32>
    %50 = vector.broadcast %49 : vector<1x64xf32> to vector<32x64xf32>
    %51 = arith.addf %48, %50 : vector<32x64xf32>
    %52 = arith.truncf %51 : vector<32x64xf32> to vector<32x64xbf16>
    %c0_29 = arith.constant 0 : index
    %c0_30 = arith.constant 0 : index
    %c0_31 = arith.constant 0 : index
    %53 = vector.load %arg13[%c0_29, %c0_30, %c0_31] : memref<1x32x64xbf16, #tpu.memory_space<vmem>>, vector<1x32x64xbf16>
    %54 = vector.shape_cast %53 : vector<1x32x64xbf16> to vector<32x64xbf16>
    %55 = vector.shape_cast %52 : vector<32x64xbf16> to vector<1x32x64xbf16>
    tpu.vector_store %arg13[%c0_29, %c0_30, %c0_31], %55 {strides = array<i32>} : memref<1x32x64xbf16, #tpu.memory_space<vmem>>, vector<1x32x64xbf16>,
    %56 = arith.truncf %3 : vector<32x64xf32> to vector<32x64xbf16>
    %c0_32 = arith.constant 0 : index
    %c0_33 = arith.constant 0 : index
    %57 = vector.load %arg9[%c0_32, %c0_33] : memref<64x128xbf16, #tpu.memory_space<vmem>>, vector<64x128xbf16>
    %cst_34 = arith.constant dense<0.000000e+00> : vector<32x128xf32>
    %58 = tpu.matmul %56, %57, %cst_34 {dimension_numbers = #tpu.dot_dimension_numbers<[1], [0], [0], [1], [0, 0, 1, 1], [], []>} : vector<32x64xbf16>, vector<64x128xbf16>, vector<32x128xf32> -> vector<32x128xf32>
    %c0_35 = arith.constant 0 : index
    %c0_36 = arith.constant 0 : index
    %59 = vector.load %arg10[%c0_35, %c0_36] : memref<1x128xf32, #tpu.memory_space<vmem>>, vector<1x128xf32>
    %60 = vector.broadcast %59 : vector<1x128xf32> to vector<32x128xf32>
    %61 = arith.addf %58, %60 : vector<32x128xf32>
    %62 = arith.truncf %61 : vector<32x128xf32> to vector<32x128xbf16>
    %c0_37 = arith.constant 0 : index
    %c0_38 = arith.constant 0 : index
    %c0_39 = arith.constant 0 : index
    %63 = vector.load %arg14[%c0_37, %c0_38, %c0_39] : memref<1x32x128xbf16, #tpu.memory_space<vmem>>, vector<1x32x128xbf16>
    %64 = vector.shape_cast %63 : vector<1x32x128xbf16> to vector<32x128xbf16>
    %65 = vector.shape_cast %62 : vector<32x128xbf16> to vector<1x32x128xbf16>
    tpu.vector_store %arg14[%c0_37, %c0_38, %c0_39], %65 {strides = array<i32>} : memref<1x32x128xbf16, #tpu.memory_space<vmem>>, vector<1x32x128xbf16>,
    return
  }
  func.func @transform_0(%arg0: i32, %arg1: i32) -> (i32, i32, i32) {
    %c0_i32 = arith.constant 0 : i32
    %c0_i32_0 = arith.constant 0 : i32
    return %arg0, %arg1, %c0_i32 : i32, i32, i32
  }
  func.func @transform_1(%arg0: i32, %arg1: i32) -> (i32, i32, i32) {
    %c0_i32 = arith.constant 0 : i32
    %c0_i32_0 = arith.constant 0 : i32
    return %arg0, %arg1, %c0_i32 : i32, i32, i32
  }
  func.func @transform_2(%arg0: i32, %arg1: i32) -> (i32, i32, i32) {
    %c0_i32 = arith.constant 0 : i32
    %c0_i32_0 = arith.constant 0 : i32
    %c0_i32_1 = arith.constant 0 : i32
    return %arg0, %c0_i32, %c0_i32_0 : i32, i32, i32
  }
  func.func @transform_3(%arg0: i32, %arg1: i32) -> (i32, i32) {
    %c0_i32 = arith.constant 0 : i32
    %c0_i32_0 = arith.constant 0 : i32
    %c0_i32_1 = arith.constant 0 : i32
    return %c0_i32, %c0_i32_0 : i32, i32
  }
  func.func @transform_4(%arg0: i32, %arg1: i32) -> (i32, i32) {
    %c0_i32 = arith.constant 0 : i32
    %c0_i32_0 = arith.constant 0 : i32
    %c0_i32_1 = arith.constant 0 : i32
    return %c0_i32, %c0_i32_0 : i32, i32
  }
  func.func @transform_5(%arg0: i32, %arg1: i32) -> (i32, i32) {
    %c0_i32 = arith.constant 0 : i32
    %c0_i32_0 = arith.constant 0 : i32
    %c0_i32_1 = arith.constant 0 : i32
    return %c0_i32, %c0_i32_0 : i32, i32
  }
  func.func @transform_6(%arg0: i32, %arg1: i32) -> (i32, i32) {
    %c0_i32 = arith.constant 0 : i32
    %c0_i32_0 = arith.constant 0 : i32
    %c0_i32_1 = arith.constant 0 : i32
    return %c0_i32, %c0_i32_0 : i32, i32
  }
  func.func @transform_7(%arg0: i32, %arg1: i32) -> (i32, i32) {
    %c0_i32 = arith.constant 0 : i32
    %c0_i32_0 = arith.constant 0 : i32
    %c0_i32_1 = arith.constant 0 : i32
    return %c0_i32, %c0_i32_0 : i32, i32
  }
  func.func @transform_8(%arg0: i32, %arg1: i32) -> (i32, i32) {
    %c0_i32 = arith.constant 0 : i32
    %c0_i32_0 = arith.constant 0 : i32
    %c0_i32_1 = arith.constant 0 : i32
    return %c0_i32, %c0_i32_0 : i32, i32
  }
  func.func @transform_9(%arg0: i32, %arg1: i32) -> (i32, i32, i32) {
    %c0_i32 = arith.constant 0 : i32
    %c0_i32_0 = arith.constant 0 : i32
    return %arg0, %arg1, %c0_i32 : i32, i32, i32
  }
  func.func @transform_10(%arg0: i32, %arg1: i32) -> (i32, i32, i32) {
    %c0_i32 = arith.constant 0 : i32
    %c0_i32_0 = arith.constant 0 : i32
    return %arg0, %arg1, %c0_i32 : i32, i32, i32
  }
  func.func @transform_11(%arg0: i32, %arg1: i32) -> (i32, i32, i32) {
    %c0_i32 = arith.constant 0 : i32
    %c0_i32_0 = arith.constant 0 : i32
    return %arg0, %arg1, %c0_i32 : i32, i32, i32
  }
  func.func @transform_12(%arg0: i32, %arg1: i32) -> (i32, i32, i32) {
    %c0_i32 = arith.constant 0 : i32
    %c0_i32_0 = arith.constant 0 : i32
    return %arg0, %arg1, %c0_i32 : i32, i32, i32
  }
}

</mosaic_0001>

<llo_original>
// kernel: tpu_custom_call.1
$region0: #{tpu_custom_call.1}
  #allocation0 [shape = 'u32[]', space=smem, size = 0x4, offset = 0x4, fixed_abs, tag = 'smem constant byte address 0x4 - core index']
  #allocation1 [shape = 'u32[72,128]{1,0:T(1,128)}', space=vmem, size = 0x9000, scoped, tag = 'internal scratch']
  %s0 = inlined_call_operand.hbm [shape: f32[2,64,64], index: 0, kind: input, shape index: {}]
  %s1 = inlined_call_operand.hbm [shape: f32[2,64,64], index: 1, kind: input, shape index: {}]
  %s2 = inlined_call_operand.vmem [shape: f32[2,6,64], index: 2, kind: input, shape index: {}]
  %s3 = inlined_call_operand.hbm [shape: bf16[64,192], index: 3, kind: input, shape index: {}]
  %s4 = inlined_call_operand.hbm [shape: f32[1,192], index: 4, kind: input, shape index: {}]
  %s5 = inlined_call_operand.vmem [shape: bf16[64,64], index: 5, kind: input, shape index: {}]
  %s6 = inlined_call_operand.vmem [shape: f32[1,64], index: 6, kind: input, shape index: {}]
  %s7 = inlined_call_operand.hbm [shape: bf16[64,128], index: 7, kind: input, shape index: {}]
  %s8 = inlined_call_operand.vmem [shape: f32[1,128], index: 8, kind: input, shape index: {}]
  %s9 = inlined_call_operand.hbm [shape: bf16[2,64,64], index: 9, kind: output, shape index: {0}]
  %s10 = inlined_call_operand.hbm [shape: bf16[2,64,128], index: 10, kind: output, shape index: {1}]
  %s11 = inlined_call_operand.hbm [shape: bf16[2,64,64], index: 11, kind: output, shape index: {2}]
  %s12 = inlined_call_operand.hbm [shape: bf16[2,64,128], index: 12, kind: output, shape index: {3}]
  %13 = xla_tuple %s9, %s10, %s11, %s12
  %s14 = sld [smem:[#allocation0]]
  $region113: #{tpu_custom_call.1} parent=0
    _
  %s16 = ssub.s32 1, %s14
  %s17 = scalar_select 0, %s16, %s14
  $region1: #{tpu_custom_call.1} parent=0
    #allocation2 [shape = 'u8[32768]{0}', space=vmem, size = 0x8000, scoped, tag = 'input window, operand 0']
    #allocation3 [shape = 's32[2]{0}', space=sflag, size = 0x8, scoped, tag = 'scoped memory for tpu_custom_call.1']
    #allocation4 [shape = 's32[2]{0}', space=sflag, size = 0x8, scoped, tag = 'scoped memory for tpu_custom_call.1']
    #allocation5 [shape = 'u8[32768]{0}', space=vmem, size = 0x8000, scoped, tag = 'input window, operand 1']
    #allocation6 [shape = 's32[2]{0}', space=sflag, size = 0x8, scoped, tag = 'scoped memory for tpu_custom_call.1']
    #allocation7 [shape = 'u8[32768]{0}', space=vmem, size = 0x8000, scoped, tag = 'input window, operand 3, single buffered']
    #allocation8 [shape = 'u8[1024]{0}', space=vmem, size = 0x400, scoped, tag = 'input window, operand 4, single buffered']
    #allocation9 [shape = 's32[1]{0}', space=sflag, size = 0x4, scoped, tag = 'scoped memory for tpu_custom_call.1']
    #allocation10 [shape = 'u8[16384]{0}', space=vmem, size = 0x4000, scoped, tag = 'input window, operand 7, single buffered']
    #allocation11 [shape = 'u8[16384]{0}', space=vmem, size = 0x4000, scoped, tag = 'output window, operand 0']
    #allocation12 [shape = 'u8[16384]{0}', space=vmem, size = 0x4000, scoped, tag = 'output window, operand 1']
    #allocation13 [shape = 's32[2]{0}', space=sflag, size = 0x8, scoped, tag = 'scoped memory for tpu_custom_call.1']
    #allocation14 [shape = 'u8[16384]{0}', space=vmem, size = 0x4000, scoped, tag = 'output window, operand 2']
    #allocation15 [shape = 'u8[16384]{0}', space=vmem, size = 0x4000, scoped, tag = 'output window, operand 3']
    #allocation16 [shape = 's32[2]{0}', space=sflag, size = 0x8, scoped, tag = 'scoped memory for tpu_custom_call.1']
    %18 = vsyncpa [#allocation3], 0
    %s19 = scalar_lea.sflag [#allocation3], 1
    %20 = vsyncpa %s19, 0
    %21 = vsyncpa [#allocation6], 0
    %s22 = scalar_lea.sflag [#allocation6], 1
    %23 = vsyncpa %s22, 0
    %24 = vsyncpa [#allocation9], 0
    %25 = vsyncpa [#allocation4], 0
    %s26 = scalar_lea.sflag [#allocation4], 1
    %27 = vsyncpa %s26, 0
    %28 = vsyncpa [#allocation13], 0
    %s29 = scalar_lea.sflag [#allocation13], 1
    %30 = vsyncpa %s29, 0
    %31 = vsyncpa [#allocation16], 0
    %s32 = scalar_lea.sflag [#allocation16], 1
    %33 = vsyncpa %s32, 0
    loop: start=0, step=1, limit=6
    $region2: #{tpu_custom_call.1} parent=1 // loop_pre_header
      _
    $region3: #{tpu_custom_call.1} parent=1 // loop_header
      %s35 = sphi 0, %s39
      %p36 = scmp.ge.s32.totalorder %s35, 6
      %s42 = sphi 0, %s54
      %s43 = sphi 0, %s50
      %s44 = sphi 0, %s42
      %s45 = sphi 0, %s43
      %s46 = sphi 0, %s44
      %s47 = sphi 0, %s45
      %s59 = sphi 0, %s61
      %s62 = sphi 0, %s59
      %s63 = sphi 0, %s62
      %s79 = sphi 0, %s63
      %s87 = sphi 0, %s89
      %s90 = sphi 0, %s87
      %s91 = sphi 0, %s90
      %s107 = sphi 0, %s91
      %s113 = sphi 0, %s115
      %s116 = sphi 0, %s113
      %s117 = sphi 0, %s116
      %s133 = sphi 0, %s117
      %s137 = sphi 0, %s137
      %s139 = sphi 0, %s137
      %s140 = sphi 0, %s139
      %s154 = sphi 0, %s140
      %s158 = sphi 0, %s158
      %s160 = sphi 0, %s158
      %s161 = sphi 0, %s160
      %s175 = sphi 0, %s161
      %s179 = sphi 0, %s179
      %s181 = sphi 0, %s179
      %s182 = sphi 0, %s181
      %s196 = sphi 0, %s182
      %s200 = sphi 0, %s200
      %s202 = sphi 0, %s200
      %s203 = sphi 0, %s202
      %s217 = sphi 0, %s203
      %s221 = sphi 0, %s221
      %s223 = sphi 0, %s221
      %s224 = sphi 0, %s223
      %s238 = sphi 0, %s224
      %s242 = sphi 0, %s242
      %s244 = sphi 0, %s242
      %s245 = sphi 0, %s244
      %s259 = sphi 0, %s245
      %s267 = sphi 0, %s269
      %s270 = sphi 0, %s267
      %s271 = sphi 0, %s270
      %s287 = sphi 0, %s271
      %s295 = sphi 0, %s297
      %s298 = sphi 0, %s295
      %s299 = sphi 0, %s298
      %s315 = sphi 0, %s299
      %s323 = sphi 0, %s325
      %s326 = sphi 0, %s323
      %s327 = sphi 0, %s326
      %s343 = sphi 0, %s327
      %s351 = sphi 0, %s353
      %s354 = sphi 0, %s351
      %s355 = sphi 0, %s354
      %s371 = sphi 0, %s355
    $region4: #{tpu_custom_call.1} parent=1 // loop_header_branch
      %38 = sbr.rel (%p36) target = $region8
    $region5: #{tpu_custom_call.1} parent=1 // loop_body
      %s40 = ssub.s32 %s35, 1
      %s41 = ssub.s32 %s35, 2
      %s48 = sadd.s32 1, %s43
      %p49 = scmp.ge.s32.totalorder %s48, 2
      %s50 = scalar_select %p49, 0, %s48
      %s51 = sadd.s32 1, %s42
      %s52 = scalar_select %p49, %s51, %s42
      %p53 = scmp.ge.s32.totalorder %s52, 2
      %s54 = scalar_select %p53, 0, %s52
      %s55 = ssub.s32 %s42, %s54
      %s56 = ssub.s32 %s43, %s50
      %s57 = sor.u32 %s55, %s56
      %p58 = scmp.eq.s32.totalorder %s57, 0
      %s60 = sadd.s32 %s59, 1
      %s61 = scalar_select %p58, %s59, %s60
      %p64 = pneg %p58
      %p65 = scmp.eq.s32.totalorder %s35, 3
      %p66 = por %p64, %p65
      %p67 = scmp.ne.s32.totalorder %s59, %s62
      %p68 = scmp.eq.s32.totalorder %s35, 0
      %p69 = por %p67, %p68
      %p70 = scmp.ne.s32.totalorder %s59, %s62
      %p71 = scmp.eq.s32.totalorder %s40, 3
      %p72 = por %p70, %p71
      %p73 = scmp.ne.s32.totalorder %s62, %s63
      %p74 = scmp.eq.s32.totalorder %s40, 0
      %p75 = por %p73, %p74
      %p76 = scmp.ne.s32.totalorder %s62, %s63
      %p77 = scmp.eq.s32.totalorder %s41, 3
      %p78 = por %p76, %p77
      %p80 = scmp.ne.s32.totalorder %s63, %s79
      %p81 = scmp.eq.s32.totalorder %s41, 0
      %p82 = por %p80, %p81
      %s83 = ssub.s32 %s42, %s54
      %s84 = ssub.s32 %s43, %s50
      %s85 = sor.u32 %s83, %s84
      %p86 = scmp.eq.s32.totalorder %s85, 0
      %s88 = sadd.s32 %s87, 1
      %s89 = scalar_select %p86, %s87, %s88
      %p92 = pneg %p86
      %p93 = scmp.eq.s32.totalorder %s35, 3
      %p94 = por %p92, %p93
      %p95 = scmp.ne.s32.totalorder %s87, %s90
      %p96 = scmp.eq.s32.totalorder %s35, 0
      %p97 = por %p95, %p96
      %p98 = scmp.ne.s32.totalorder %s87, %s90
      %p99 = scmp.eq.s32.totalorder %s40, 3
      %p100 = por %p98, %p99
      %p101 = scmp.ne.s32.totalorder %s90, %s91
      %p102 = scmp.eq.s32.totalorder %s40, 0
      %p103 = por %p101, %p102
      %p104 = scmp.ne.s32.totalorder %s90, %s91
      %p105 = scmp.eq.s32.totalorder %s41, 3
      %p106 = por %p104, %p105
      %p108 = scmp.ne.s32.totalorder %s91, %s107
      %p109 = scmp.eq.s32.totalorder %s41, 0
      %p110 = por %p108, %p109
      %s111 = ssub.s32 %s42, %s54
      %p112 = scmp.eq.s32.totalorder %s111, 0
      %s114 = sadd.s32 %s113, 1
      %s115 = scalar_select %p112, %s113, %s114
      %p118 = pneg %p112
      %p119 = scmp.eq.s32.totalorder %s35, 3
      %p120 = por %p118, %p119
      %p121 = scmp.ne.s32.totalorder %s113, %s116
      %p122 = scmp.eq.s32.totalorder %s35, 0
      %p123 = por %p121, %p122
      %p124 = scmp.ne.s32.totalorder %s113, %s116
      %p125 = scmp.eq.s32.totalorder %s40, 3
      %p126 = por %p124, %p125
      %p127 = scmp.ne.s32.totalorder %s116, %s117
      %p128 = scmp.eq.s32.totalorder %s40, 0
      %p129 = por %p127, %p128
      %p130 = scmp.ne.s32.totalorder %s116, %s117
      %p131 = scmp.eq.s32.totalorder %s41, 3
      %p132 = por %p130, %p131
      %p134 = scmp.ne.s32.totalorder %s117, %s133
      %p135 = scmp.eq.s32.totalorder %s41, 0
      %p136 = por %p134, %p135
      %s138 = sadd.s32 %s137, 1
      %p141 = scmp.eq.s32.totalorder %s35, 3
      %p142 = scmp.ne.s32.totalorder %s137, %s139
      %p143 = scmp.eq.s32.totalorder %s35, 0
      %p144 = por %p142, %p143
      %p145 = scmp.ne.s32.totalorder %s137, %s139
      %p146 = scmp.eq.s32.totalorder %s40, 3
      %p147 = por %p145, %p146
      %p148 = scmp.ne.s32.totalorder %s139, %s140
      %p149 = scmp.eq.s32.totalorder %s40, 0
      %p150 = por %p148, %p149
      %p151 = scmp.ne.s32.totalorder %s139, %s140
      %p152 = scmp.eq.s32.totalorder %s41, 3
      %p153 = por %p151, %p152
      %p155 = scmp.ne.s32.totalorder %s140, %s154
      %p156 = scmp.eq.s32.totalorder %s41, 0
      %p157 = por %p155, %p156
      %s159 = sadd.s32 %s158, 1
      %p162 = scmp.eq.s32.totalorder %s35, 3
      %p163 = scmp.ne.s32.totalorder %s158, %s160
      %p164 = scmp.eq.s32.totalorder %s35, 0
      %p165 = por %p163, %p164
      %p166 = scmp.ne.s32.totalorder %s158, %s160
      %p167 = scmp.eq.s32.totalorder %s40, 3
      %p168 = por %p166, %p167
      %p169 = scmp.ne.s32.totalorder %s160, %s161
      %p170 = scmp.eq.s32.totalorder %s40, 0
      %p171 = por %p169, %p170
      %p172 = scmp.ne.s32.totalorder %s160, %s161
      %p173 = scmp.eq.s32.totalorder %s41, 3
      %p174 = por %p172, %p173
      %p176 = scmp.ne.s32.totalorder %s161, %s175
      %p177 = scmp.eq.s32.totalorder %s41, 0
      %p178 = por %p176, %p177
      %s180 = sadd.s32 %s179, 1
      %p183 = scmp.eq.s32.totalorder %s35, 3
      %p184 = scmp.ne.s32.totalorder %s179, %s181
      %p185 = scmp.eq.s32.totalorder %s35, 0
      %p186 = por %p184, %p185
      %p187 = scmp.ne.s32.totalorder %s179, %s181
      %p188 = scmp.eq.s32.totalorder %s40, 3
      %p189 = por %p187, %p188
      %p190 = scmp.ne.s32.totalorder %s181, %s182
      %p191 = scmp.eq.s32.totalorder %s40, 0
      %p192 = por %p190, %p191
      %p193 = scmp.ne.s32.totalorder %s181, %s182
      %p194 = scmp.eq.s32.totalorder %s41, 3
      %p195 = por %p193, %p194
      %p197 = scmp.ne.s32.totalorder %s182, %s196
      %p198 = scmp.eq.s32.totalorder %s41, 0
      %p199 = por %p197, %p198
      %s201 = sadd.s32 %s200, 1
      %p204 = scmp.eq.s32.totalorder %s35, 3
      %p205 = scmp.ne.s32.totalorder %s200, %s202
      %p206 = scmp.eq.s32.totalorder %s35, 0
      %p207 = por %p205, %p206
      %p208 = scmp.ne.s32.totalorder %s200, %s202
      %p209 = scmp.eq.s32.totalorder %s40, 3
      %p210 = por %p208, %p209
      %p211 = scmp.ne.s32.totalorder %s202, %s203
      %p212 = scmp.eq.s32.totalorder %s40, 0
      %p213 = por %p211, %p212
      %p214 = scmp.ne.s32.totalorder %s202, %s203
      %p215 = scmp.eq.s32.totalorder %s41, 3
      %p216 = por %p214, %p215
      %p218 = scmp.ne.s32.totalorder %s203, %s217
      %p219 = scmp.eq.s32.totalorder %s41, 0
      %p220 = por %p218, %p219
      %s222 = sadd.s32 %s221, 1
      %p225 = scmp.eq.s32.totalorder %s35, 3
      %p226 = scmp.ne.s32.totalorder %s221, %s223
      %p227 = scmp.eq.s32.totalorder %s35, 0
      %p228 = por %p226, %p227
      %p229 = scmp.ne.s32.totalorder %s221, %s223
      %p230 = scmp.eq.s32.totalorder %s40, 3
      %p231 = por %p229, %p230
      %p232 = scmp.ne.s32.totalorder %s223, %s224
      %p233 = scmp.eq.s32.totalorder %s40, 0
      %p234 = por %p232, %p233
      %p235 = scmp.ne.s32.totalorder %s223, %s224
      %p236 = scmp.eq.s32.totalorder %s41, 3
      %p237 = por %p235, %p236
      %p239 = scmp.ne.s32.totalorder %s224, %s238
      %p240 = scmp.eq.s32.totalorder %s41, 0
      %p241 = por %p239, %p240
      %s243 = sadd.s32 %s242, 1
      %p246 = scmp.eq.s32.totalorder %s35, 3
      %p247 = scmp.ne.s32.totalorder %s242, %s244
      %p248 = scmp.eq.s32.totalorder %s35, 0
      %p249 = por %p247, %p248
      %p250 = scmp.ne.s32.totalorder %s242, %s244
      %p251 = scmp.eq.s32.totalorder %s40, 3
      %p252 = por %p250, %p251
      %p253 = scmp.ne.s32.totalorder %s244, %s245
      %p254 = scmp.eq.s32.totalorder %s40, 0
      %p255 = por %p253, %p254
      %p256 = scmp.ne.s32.totalorder %s244, %s245
      %p257 = scmp.eq.s32.totalorder %s41, 3
      %p258 = por %p256, %p257
      %p260 = scmp.ne.s32.totalorder %s245, %s259
      %p261 = scmp.eq.s32.totalorder %s41, 0
      %p262 = por %p260, %p261
      %s263 = ssub.s32 %s42, %s54
      %s264 = ssub.s32 %s43, %s50
      %s265 = sor.u32 %s263, %s264
      %p266 = scmp.eq.s32.totalorder %s265, 0
      %s268 = sadd.s32 %s267, 1
      %s269 = scalar_select %p266, %s267, %s268
      %p272 = pneg %p266
      %p273 = scmp.eq.s32.totalorder %s35, 3
      %p274 = por %p272, %p273
      %p275 = scmp.ne.s32.totalorder %s267, %s270
      %p276 = scmp.eq.s32.totalorder %s35, 0
      %p277 = por %p275, %p276
      %p278 = scmp.ne.s32.totalorder %s267, %s270
      %p279 = scmp.eq.s32.totalorder %s40, 3
      %p280 = por %p278, %p279
      %p281 = scmp.ne.s32.totalorder %s270, %s271
      %p282 = scmp.eq.s32.totalorder %s40, 0
      %p283 = por %p281, %p282
      %p284 = scmp.ne.s32.totalorder %s270, %s271
      %p285 = scmp.eq.s32.totalorder %s41, 3
      %p286 = por %p284, %p285
      %p288 = scmp.ne.s32.totalorder %s271, %s287
      %p289 = scmp.eq.s32.totalorder %s41, 0
      %p290 = por %p288, %p289
      %s291 = ssub.s32 %s42, %s54
      %s292 = ssub.s32 %s43, %s50
      %s293 = sor.u32 %s291, %s292
      %p294 = scmp.eq.s32.totalorder %s293, 0
      %s296 = sadd.s32 %s295, 1
      %s297 = scalar_select %p294, %s295, %s296
      %p300 = pneg %p294
      %p301 = scmp.eq.s32.totalorder %s35, 3
      %p302 = por %p300, %p301
      %p303 = scmp.ne.s32.totalorder %s295, %s298
      %p304 = scmp.eq.s32.totalorder %s35, 0
      %p305 = por %p303, %p304
      %p306 = scmp.ne.s32.totalorder %s295, %s298
      %p307 = scmp.eq.s32.totalorder %s40, 3
      %p308 = por %p306, %p307
      %p309 = scmp.ne.s32.totalorder %s298, %s299
      %p310 = scmp.eq.s32.totalorder %s40, 0
      %p311 = por %p309, %p310
      %p312 = scmp.ne.s32.totalorder %s298, %s299
      %p313 = scmp.eq.s32.totalorder %s41, 3
      %p314 = por %p312, %p313
      %p316 = scmp.ne.s32.totalorder %s299, %s315
      %p317 = scmp.eq.s32.totalorder %s41, 0
      %p318 = por %p316, %p317
      %s319 = ssub.s32 %s42, %s54
      %s320 = ssub.s32 %s43, %s50
      %s321 = sor.u32 %s319, %s320
      %p322 = scmp.eq.s32.totalorder %s321, 0
      %s324 = sadd.s32 %s323, 1
      %s325 = scalar_select %p322, %s323, %s324
      %p328 = pneg %p322
      %p329 = scmp.eq.s32.totalorder %s35, 3
      %p330 = por %p328, %p329
      %p331 = scmp.ne.s32.totalorder %s323, %s326
      %p332 = scmp.eq.s32.totalorder %s35, 0
      %p333 = por %p331, %p332
      %p334 = scmp.ne.s32.totalorder %s323, %s326
      %p335 = scmp.eq.s32.totalorder %s40, 3
      %p336 = por %p334, %p335
      %p337 = scmp.ne.s32.totalorder %s326, %s327
      %p338 = scmp.eq.s32.totalorder %s40, 0
      %p339 = por %p337, %p338
      %p340 = scmp.ne.s32.totalorder %s326, %s327
      %p341 = scmp.eq.s32.totalorder %s41, 3
      %p342 = por %p340, %p341
      %p344 = scmp.ne.s32.totalorder %s327, %s343
      %p345 = scmp.eq.s32.totalorder %s41, 0
      %p346 = por %p344, %p345
      %s347 = ssub.s32 %s42, %s54
      %s348 = ssub.s32 %s43, %s50
      %s349 = sor.u32 %s347, %s348
      %p350 = scmp.eq.s32.totalorder %s349, 0
      %s352 = sadd.s32 %s351, 1
      %s353 = scalar_select %p350, %s351, %s352
      %p356 = pneg %p350
      %p357 = scmp.eq.s32.totalorder %s35, 3
      %p358 = por %p356, %p357
      %p359 = scmp.ne.s32.totalorder %s351, %s354
      %p360 = scmp.eq.s32.totalorder %s35, 0
      %p361 = por %p359, %p360
      %p362 = scmp.ne.s32.totalorder %s351, %s354
      %p363 = scmp.eq.s32.totalorder %s40, 3
      %p364 = por %p362, %p363
      %p365 = scmp.ne.s32.totalorder %s354, %s355
      %p366 = scmp.eq.s32.totalorder %s40, 0
      %p367 = por %p365, %p366
      %p368 = scmp.ne.s32.totalorder %s354, %s355
      %p369 = scmp.eq.s32.totalorder %s41, 3
      %p370 = por %p368, %p369
      %p372 = scmp.ne.s32.totalorder %s355, %s371
      %p373 = scmp.eq.s32.totalorder %s41, 0
      %p374 = por %p372, %p373
      %p375 = scmp.le.s32.totalorder 1, %s35
      %p376 = scmp.lt.s32.totalorder %s35, 5
      %p377 = pnand %p375, %p376
      %p378 = pneg %p377
      // Predicated region
      $region9: #{tpu_custom_call.1} parent=5 // pred_check
        _
      $region10: #{tpu_custom_call.1} parent=5 // pred_check_branch
        %380 = sbr.rel (%p377) target = $region12
      $region11: #{tpu_custom_call.1} parent=5 // pred_region
        %s381 = ssub.s32 %s35, 1
        // Predicated region
        $region13: #{tpu_custom_call.1} parent=11 // pred_check
          %p382 = pneg %p150
        $region14: #{tpu_custom_call.1} parent=11 // pred_check_branch
          %384 = sbr.rel (%p382) target = $region16
        $region15: #{tpu_custom_call.1} parent=11 // pred_region
          %386 = vsyncadd [#allocation6], 0
          %s387 = sshll.u32 %s3, 4
          %s388 = int_to_ptr.hbm [resolvable:$true] %s387
          %s389 = sshll.u32 [#allocation7], 4
          %s390 = int_to_ptr.vmem [resolvable:$true] %s389
          %395 = dma.hbm_to_vmem [thread:$0]  %s388, 1024, %s390, [#allocation6], 128, 128, 8
        $region16: #{tpu_custom_call.1} parent=11 // pred_fallthru
          _
        // Predicated region
        $region17: #{tpu_custom_call.1} parent=11 // pred_check
          %p396 = pneg %p171
        $region18: #{tpu_custom_call.1} parent=11 // pred_check_branch
          %398 = sbr.rel (%p396) target = $region20
        $region19: #{tpu_custom_call.1} parent=11 // pred_region
          %400 = vsyncadd [#allocation9], 0
          %s402 = sshll.u32 %s4, 4
          %s403 = int_to_ptr.hbm [resolvable:$true] %s402
          %s404 = sshll.u32 [#allocation8], 4
          %s405 = int_to_ptr.vmem [resolvable:$true] %s404
          %407 = dma.hbm_to_vmem [thread:$0]  %s403, 32, %s405, [#allocation9]
        $region20: #{tpu_custom_call.1} parent=11 // pred_fallthru
          _
        // Predicated region
        $region21: #{tpu_custom_call.1} parent=11 // pred_check
          %p408 = pneg %p192
        $region22: #{tpu_custom_call.1} parent=11 // pred_check_branch
          %410 = sbr.rel (%p408) target = $region24
        $region23: #{tpu_custom_call.1} parent=11 // pred_region
          _
        $region24: #{tpu_custom_call.1} parent=11 // pred_fallthru
          _
        // Predicated region
        $region25: #{tpu_custom_call.1} parent=11 // pred_check
          %p411 = pneg %p213
        $region26: #{tpu_custom_call.1} parent=11 // pred_check_branch
          %413 = sbr.rel (%p411) target = $region28
        $region27: #{tpu_custom_call.1} parent=11 // pred_region
          _
        $region28: #{tpu_custom_call.1} parent=11 // pred_fallthru
          _
        // Predicated region
        $region29: #{tpu_custom_call.1} parent=11 // pred_check
          %p414 = pneg %p234
        $region30: #{tpu_custom_call.1} parent=11 // pred_check_branch
          %416 = sbr.rel (%p414) target = $region32
        $region31: #{tpu_custom_call.1} parent=11 // pred_region
          %418 = vsyncadd [#allocation9], 0
          %s419 = sshll.u32 %s7, 4
          %s420 = int_to_ptr.hbm [resolvable:$true] %s419
          %s421 = sshll.u32 [#allocation10], 4
          %s422 = int_to_ptr.vmem [resolvable:$true] %s421
          %427 = dma.hbm_to_vmem [thread:$0]  %s420, 512, %s422, [#allocation9], 64, 64, 4
        $region32: #{tpu_custom_call.1} parent=11 // pred_fallthru
          _
        // Predicated region
        $region33: #{tpu_custom_call.1} parent=11 // pred_check
          %p428 = pneg %p255
        $region34: #{tpu_custom_call.1} parent=11 // pred_check_branch
          %430 = sbr.rel (%p428) target = $region36
        $region35: #{tpu_custom_call.1} parent=11 // pred_region
          _
        $region36: #{tpu_custom_call.1} parent=11 // pred_fallthru
          _
      $region12: #{tpu_custom_call.1} parent=5 // pred_fallthru
        _
      %p431 = scmp.lt.s32.totalorder %s35, 4
      // Predicated region
      $region37: #{tpu_custom_call.1} parent=5 // pred_check
        %p432 = pneg %p431
      $region38: #{tpu_custom_call.1} parent=5 // pred_check_branch
        %434 = sbr.rel (%p432) target = $region40
      $region39: #{tpu_custom_call.1} parent=5 // pred_region
        // Predicated region
        $region41: #{tpu_custom_call.1} parent=39 // pred_check
          %p435 = pneg %p69
        $region42: #{tpu_custom_call.1} parent=39 // pred_check_branch
          %437 = sbr.rel (%p435) target = $region44
        $region43: #{tpu_custom_call.1} parent=39 // pred_region
          %s438 = sand.u32 %s59, 1
          %s439 = scalar_lea.sflag [#allocation3], %s438
          %s440 = sand.u32 %s59, 1
          %s441 = smul.addr %s440, 32
          %s442 = scalar_lea.vmem [#allocation2], %s441
          %s443 = smul.u32 4, %s43
          %445 = vsyncadd %s439, 0
          %s446 = smul.addr %s42, 8
          %s447 = sadd.s32 %s443, %s446
          %s448 = smul.addr %s447, 8
          %s449 = scalar_lea.hbm %s0, %s448
          %s450 = sshll.u32 %s449, 4
          %s451 = int_to_ptr.hbm [resolvable:$true] %s450
          %s452 = sshll.u32 %s442, 4
          %s453 = int_to_ptr.vmem [resolvable:$true] %s452
          %458 = dma.hbm_to_vmem [thread:$0]  %s451, 512, %s453, %s439, 128, 128, 8
        $region44: #{tpu_custom_call.1} parent=39 // pred_fallthru
          _
        // Predicated region
        $region45: #{tpu_custom_call.1} parent=39 // pred_check
          %p459 = pneg %p97
        $region46: #{tpu_custom_call.1} parent=39 // pred_check_branch
          %461 = sbr.rel (%p459) target = $region48
        $region47: #{tpu_custom_call.1} parent=39 // pred_region
          %s462 = sand.u32 %s35, 1
          %s463 = scalar_lea.sflag [#allocation6], %s462
          %s464 = sand.u32 %s87, 1
          %s465 = smul.addr %s464, 32
          %s466 = scalar_lea.vmem [#allocation5], %s465
          %s467 = smul.u32 4, %s43
          %469 = vsyncadd %s463, 0
          %s470 = smul.addr %s42, 8
          %s471 = sadd.s32 %s467, %s470
          %s472 = smul.addr %s471, 8
          %s473 = scalar_lea.hbm %s1, %s472
          %s474 = sshll.u32 %s473, 4
          %s475 = int_to_ptr.hbm [resolvable:$true] %s474
          %s476 = sshll.u32 %s466, 4
          %s477 = int_to_ptr.vmem [resolvable:$true] %s476
          %482 = dma.hbm_to_vmem [thread:$0]  %s475, 512, %s477, %s463, 128, 128, 8
        $region48: #{tpu_custom_call.1} parent=39 // pred_fallthru
          _
        // Predicated region
        $region49: #{tpu_custom_call.1} parent=39 // pred_check
          %p483 = pneg %p123
        $region50: #{tpu_custom_call.1} parent=39 // pred_check_branch
          %485 = sbr.rel (%p483) target = $region52
        $region51: #{tpu_custom_call.1} parent=39 // pred_region
          %p486 = scmp.lt.s32.totalorder %s42, 1
          %s487 = scalar_select %p486, %s42, 1
          %s488 = smul.addr %s487, 8
          %s489 = scalar_lea.vmem %s2, %s488
        $region52: #{tpu_custom_call.1} parent=39 // pred_fallthru
          _
      $region40: #{tpu_custom_call.1} parent=5 // pred_fallthru
        _
      %p490 = scmp.le.s32.totalorder 1, %s35
      %p491 = scmp.lt.s32.totalorder %s35, 5
      %p492 = pnand %p490, %p491
      %p493 = pneg %p492
      // Predicated region
      $region53: #{tpu_custom_call.1} parent=5 // pred_check
        _
      $region54: #{tpu_custom_call.1} parent=5 // pred_check_branch
        %495 = sbr.rel (%p492) target = $region56
      $region55: #{tpu_custom_call.1} parent=5 // pred_region
        %s496 = ssub.s32 %s35, 1
        %s497 = sand.u32 %s62, 1
        %s498 = scalar_lea.sflag [#allocation3], %s497
        %s499 = sand.u32 %s62, 1
        %s500 = smul.addr %s499, 32
        %s501 = scalar_lea.vmem [#allocation2], %s500
        // Predicated region
        $region57: #{tpu_custom_call.1} parent=55 // pred_check
          %p502 = pneg %p75
        $region58: #{tpu_custom_call.1} parent=55 // pred_check_branch
          %504 = sbr.rel (%p502) target = $region60
        $region59: #{tpu_custom_call.1} parent=55 // pred_region
          %506 = dma.done %s498, 512
        $region60: #{tpu_custom_call.1} parent=55 // pred_fallthru
          _
        %s507 = sand.u32 %s40, 1
        %s508 = scalar_lea.sflag [#allocation6], %s507
        %s509 = sand.u32 %s90, 1
        %s510 = smul.addr %s509, 32
        %s511 = scalar_lea.vmem [#allocation5], %s510
        // Predicated region
        $region61: #{tpu_custom_call.1} parent=55 // pred_check
          %p512 = pneg %p103
        $region62: #{tpu_custom_call.1} parent=55 // pred_check_branch
          %514 = sbr.rel (%p512) target = $region64
        $region63: #{tpu_custom_call.1} parent=55 // pred_region
          %516 = dma.done %s508, 512
        $region64: #{tpu_custom_call.1} parent=55 // pred_fallthru
          _
        // Predicated region
        $region65: #{tpu_custom_call.1} parent=55 // pred_check
          %p517 = pneg %p150
        $region66: #{tpu_custom_call.1} parent=55 // pred_check_branch
          %519 = sbr.rel (%p517) target = $region68
        $region67: #{tpu_custom_call.1} parent=55 // pred_region
          %521 = dma.done [#allocation6], 1024
        $region68: #{tpu_custom_call.1} parent=55 // pred_fallthru
          _
        // Predicated region
        $region69: #{tpu_custom_call.1} parent=55 // pred_check
          %p522 = pneg %p171
        $region70: #{tpu_custom_call.1} parent=55 // pred_check_branch
          %524 = sbr.rel (%p522) target = $region72
        $region71: #{tpu_custom_call.1} parent=55 // pred_region
          %526 = dma.done [#allocation9], 32
        $region72: #{tpu_custom_call.1} parent=55 // pred_fallthru
          _
        // Predicated region
        $region73: #{tpu_custom_call.1} parent=55 // pred_check
          %p527 = pneg %p234
        $region74: #{tpu_custom_call.1} parent=55 // pred_check_branch
          %529 = sbr.rel (%p527) target = $region76
        $region75: #{tpu_custom_call.1} parent=55 // pred_region
          %531 = dma.done [#allocation9], 512
        $region76: #{tpu_custom_call.1} parent=55 // pred_fallthru
          _
        %s532 = sand.u32 %s62, 1
        %s533 = scalar_lea.sflag [#allocation3], %s532
        %s534 = sand.u32 %s62, 1
        %s535 = smul.addr %s534, 32
        %s536 = scalar_lea.vmem [#allocation2], %s535
        %p537 = pneg %p75
        %p538 = pneg %p72
        %s539 = sand.u32 %s40, 1
        %s540 = scalar_lea.sflag [#allocation6], %s539
        %s541 = sand.u32 %s90, 1
        %s542 = smul.addr %s541, 32
        %s543 = scalar_lea.vmem [#allocation5], %s542
        %p544 = pneg %p103
        %p545 = pneg %p100
        %p546 = scmp.lt.s32.totalorder %s44, 1
        %s547 = scalar_select %p546, %s44, 1
        %s548 = smul.addr %s547, 8
        %s549 = scalar_lea.vmem %s2, %s548
        %p550 = pneg %p129
        %p551 = pneg %p126
        %p552 = pneg %p150
        %p553 = pneg %p147
        %p554 = pneg %p171
        %p555 = pneg %p168
        %p556 = pneg %p192
        %p557 = pneg %p189
        %p558 = pneg %p213
        %p559 = pneg %p210
        %p560 = pneg %p234
        %p561 = pneg %p231
        %p562 = pneg %p255
        %p563 = pneg %p252
        %p564 = pneg %p283
        %p565 = pneg %p280
        %s566 = sand.u32 %s270, 1
        %s567 = scalar_lea.sflag [#allocation4], %s566
        %s568 = sand.u32 %s270, 1
        %s569 = smul.addr %s568, 16
        %s570 = scalar_lea.vmem [#allocation11], %s569
        %p571 = pneg %p311
        %p572 = pneg %p308
        %s573 = sand.u32 %s40, 1
        %s574 = scalar_lea.sflag [#allocation13], %s573
        %s575 = sand.u32 %s298, 1
        %s576 = smul.addr %s575, 16
        %s577 = scalar_lea.vmem [#allocation12], %s576
        %p578 = pneg %p339
        %p579 = pneg %p336
        %s580 = sand.u32 %s40, 1
        %s581 = scalar_lea.sflag [#allocation13], %s580
        %s582 = sand.u32 %s326, 1
        %s583 = smul.addr %s582, 16
        %s584 = scalar_lea.vmem [#allocation14], %s583
        %p585 = pneg %p367
        %p586 = pneg %p364
        %s587 = sand.u32 %s354, 1
        %s588 = scalar_lea.sflag [#allocation16], %s587
        %s589 = sand.u32 %s354, 1
        %s590 = smul.addr %s589, 16
        %s591 = scalar_lea.vmem [#allocation15], %s590
        %s592 = smul.u32 4, %s45
        %s593 = smul.u32 4, %s45
        %p594 = scmp.lt.s32.totalorder %s44, 1
        %s595 = scalar_select %p594, %s44, 1
        %s596 = smul.addr %s595, 8
        %s597 = scalar_lea.vmem %s2, %s596
        %s598 = smul.u32 4, %s45
        %s599 = smul.u32 4, %s45
        %s600 = smul.u32 4, %s45
        %s601 = smul.u32 4, %s45
        %v603 = vld [vmem:[%s501] sm:$0xff]
        %v604 = vld [vmem:[%s501 + $0x8] sm:$0xff]
        %v605 = vld [vmem:[%s501 + $0x10] sm:$0xff]
        %v606 = vld [vmem:[%s501 + $0x18] sm:$0xff]
        %v607 = vld [vmem:[%s511] sm:$0xff]
        %v608 = vld [vmem:[%s511 + $0x8] sm:$0xff]
        %v609 = vld [vmem:[%s511 + $0x10] sm:$0xff]
        %v610 = vld [vmem:[%s511 + $0x18] sm:$0xff]
        %v611 = vld [vmem:[%s597] sm:$0x3f]
        %vm612 = vcmask 523264
        %v613 = vsel %vm612, %v603, 0.0
        %614 = vadd.xlane.f32.xlu0 %v613
        %v615 = vpop.xlane.xlu0 %614
        %v616 = vsel %vm612, %v604, 0.0
        %617 = vadd.xlane.f32.xlu0 %v616
        %v618 = vpop.xlane.xlu0 %617
        %v619 = vsel %vm612, %v605, 0.0
        %620 = vadd.xlane.f32.xlu0 %v619
        %v621 = vpop.xlane.xlu0 %620
        %v622 = vsel %vm612, %v606, 0.0
        %623 = vadd.xlane.f32.xlu0 %v622
        %v624 = vpop.xlane.xlu0 %623
        %v625 = vrcp.pop 64.0
        %v626 = vmul.f32 64.0, %v625
        %v627 = vsub.f32 1.0, %v626
        %v628 = vmul.f32 %v625, %v627
        %v629 = vadd.f32 %v625, %v628
        %vm630 = vweird.f32 %v625
        %v631 = vsel %vm630, %v625, %v629
        %v632 = vmul.f32 %v615, %v631
        %v633 = vmul.f32 %v618, %v631
        %v634 = vmul.f32 %v621, %v631
        %v635 = vmul.f32 %v624, %v631
        %v636 = vsub.f32 %v603, %v632
        %v637 = vsub.f32 %v604, %v633
        %v638 = vsub.f32 %v605, %v634
        %v639 = vsub.f32 %v606, %v635
        %v640 = vmul.f32 %v636, %v636
        %v641 = vmul.f32 %v637, %v637
        %v642 = vmul.f32 %v638, %v638
        %v643 = vmul.f32 %v639, %v639
        %v644 = vsel %vm612, %v640, 0.0
        %645 = vadd.xlane.f32.xlu0 %v644
        %v646 = vpop.xlane.xlu0 %645
        %v647 = vsel %vm612, %v641, 0.0
        %648 = vadd.xlane.f32.xlu0 %v647
        %v649 = vpop.xlane.xlu0 %648
        %v650 = vsel %vm612, %v642, 0.0
        %651 = vadd.xlane.f32.xlu0 %v650
        %v652 = vpop.xlane.xlu0 %651
        %v653 = vsel %vm612, %v643, 0.0
        %654 = vadd.xlane.f32.xlu0 %v653
        %v655 = vpop.xlane.xlu0 %654
        %v656 = vmul.f32 %v646, %v631
        %v657 = vmul.f32 %v649, %v631
        %v658 = vmul.f32 %v652, %v631
        %v659 = vmul.f32 %v655, %v631
        %v660 = vadd.f32 %v656, 1e-06
        %v661 = vadd.f32 %v657, 1e-06
        %v662 = vadd.f32 %v658, 1e-06
        %v663 = vadd.f32 %v659, 1e-06
        %v664 = vrsqrt.pop %v660
        %v665 = vmul.f32 %v664, %v660
        %v666 = vmul.f32 %v665, %v664
        %v667 = vmul.f32 0.5, %v666
        %v668 = vsub.f32 1.5, %v667
        %v669 = vmul.f32 %v664, %v668
        %vm670 = vweird.f32 %v660
        %vm671 = vweird.f32 %v664
        %vm672 = vmor %vm670, %vm671
        %v673 = vsel %vm672, %v664, %v669
        %v674 = vrsqrt.pop %v661
        %v675 = vmul.f32 %v674, %v661
        %v676 = vmul.f32 %v675, %v674
        %v677 = vmul.f32 0.5, %v676
        %v678 = vsub.f32 1.5, %v677
        %v679 = vmul.f32 %v674, %v678
        %vm680 = vweird.f32 %v661
        %vm681 = vweird.f32 %v674
        %vm682 = vmor %vm680, %vm681
        %v683 = vsel %vm682, %v674, %v679
        %v684 = vrsqrt.pop %v662
        %v685 = vmul.f32 %v684, %v662
        %v686 = vmul.f32 %v685, %v684
        %v687 = vmul.f32 0.5, %v686
        %v688 = vsub.f32 1.5, %v687
        %v689 = vmul.f32 %v684, %v688
        %vm690 = vweird.f32 %v662
        %vm691 = vweird.f32 %v684
        %vm692 = vmor %vm690, %vm691
        %v693 = vsel %vm692, %v684, %v689
        %v694 = vrsqrt.pop %v663
        %v695 = vmul.f32 %v694, %v663
        %v696 = vmul.f32 %v695, %v694
        %v697 = vmul.f32 0.5, %v696
        %v698 = vsub.f32 1.5, %v697
        %v699 = vmul.f32 %v694, %v698
        %vm700 = vweird.f32 %v663
        %vm701 = vweird.f32 %v694
        %vm702 = vmor %vm700, %vm701
        %v703 = vsel %vm702, %v694, %v699
        %v704 = vmul.f32 %v636, %v673
        %v705 = vmul.f32 %v637, %v683
        %v706 = vmul.f32 %v638, %v693
        %v707 = vmul.f32 %v639, %v703
        %v708 = vadd.f32 %v611, 1.0
        %v709 = vperm.slane %v708, 1
        %v710 = vmul.f32 %v704, %v709
        %v711 = vmul.f32 %v705, %v709
        %v712 = vmul.f32 %v706, %v709
        %v713 = vmul.f32 %v707, %v709
        %v714 = vperm.slane %v611, 0
        %v715 = vadd.f32 %v710, %v714
        %v716 = vadd.f32 %v711, %v714
        %v717 = vadd.f32 %v712, %v714
        %v718 = vadd.f32 %v713, %v714
        %v719 = vpack.c.bf16 %v716, %v715
        %v720 = vpack.c.bf16 %v718, %v717
        %v721 = vld [vmem:[#allocation7] sm:$0xff]
        %v722 = vld [vmem:[#allocation7 + $0x8] sm:$0xff]
        %v723 = vld [vmem:[#allocation7 + $0x10] sm:$0xff]
        %v724 = vld [vmem:[#allocation7 + $0x18] sm:$0xff]
        %v725 = vld [vmem:[#allocation7 + $0x20] sm:$0xff]
        %v726 = vld [vmem:[#allocation7 + $0x28] sm:$0xff]
        %v727 = vld [vmem:[#allocation7 + $0x30] sm:$0xff]
        %v728 = vld [vmem:[#allocation7 + $0x38] sm:$0xff]
        %v729 = vld [vmem:[#allocation8] sm:$0x3]
        %v731 = vperm.slane %v729, 0
        %v732 = vperm.slane %v729, 1
        %v743 = vunpack.c.l.b16 %v721
        %v744 = vunpack.c.h.b16 %v721
        %v745 = vunpack.c.l.b16 %v722
        %v746 = vunpack.c.h.b16 %v722
        %v747 = vunpack.c.l.b16 %v723
        %v748 = vunpack.c.h.b16 %v723
        %v749 = vunpack.c.l.b16 %v724
        %v750 = vunpack.c.h.b16 %v724
        %v751 = vunpack.c.l.b16 %v725
        %v752 = vunpack.c.h.b16 %v725
        %v753 = vunpack.c.l.b16 %v726
        %v754 = vunpack.c.h.b16 %v726
        %v755 = vunpack.c.l.b16 %v727
        %v756 = vunpack.c.h.b16 %v727
        %v757 = vunpack.c.l.b16 %v728
        %v758 = vunpack.c.h.b16 %v728
        %v759 = vpack.c.b16 %v745, %v743
        %v760 = vpack.c.b16 %v746, %v744
        %v761 = vpack.c.b16 %v749, %v747
        %v762 = vpack.c.b16 %v750, %v748
        %v763 = vpack.c.b16 %v753, %v751
        %v764 = vpack.c.b16 %v754, %v752
        %v765 = vpack.c.b16 %v757, %v755
        %v766 = vpack.c.b16 %v758, %v756
        %v776 = vsel %vm612, %v719, 0
        %v779 = vsel %vm612, %v720, 0
        %781 = vmatpush.bf16.msra.mxu0 0
        %782 = vmatpush.bf16.msra.mxu0 0
        %783 = vmatpush.bf16.msra.mxu0 0
        %784 = vmatpush.bf16.msra.mxu0 0
        %785 = vmatpush.bf16.msra.mxu0 %v765
        %786 = vmatpush.bf16.msra.mxu0 %v763
        %787 = vmatpush.bf16.msra.mxu0 %v761
        %788 = vmatpush.bf16.msra.mxu0 %v759
        %789 = vmatmul.bf16.gmra.mxu0 %v776
        %v790 = vpop.f32.mrf.mxu0
        %v791 = vadd.f32 %v731, %v790
        %v792 = vpop.f32.mrf.mxu0
        %v793 = vadd.f32 %v731, %v792
        %794 = vmatmul.bf16.gmra.mxu0 %v779
        %v795 = vpop.f32.mrf.mxu0
        %v796 = vadd.f32 %v731, %v795
        %v797 = vpop.f32.mrf.mxu0
        %v798 = vadd.f32 %v731, %v797
        %799 = vdwg.mxu0
        %800 = vmatpush.bf16.msra.mxu0 0
        %801 = vmatpush.bf16.msra.mxu0 0
        %802 = vmatpush.bf16.msra.mxu0 0
        %803 = vmatpush.bf16.msra.mxu0 0
        %804 = vmatpush.bf16.msra.mxu0 %v766
        %805 = vmatpush.bf16.msra.mxu0 %v764
        %806 = vmatpush.bf16.msra.mxu0 %v762
        %807 = vmatpush.bf16.msra.mxu0 %v760
        %808 = vmatmul.bf16.gmra.mxu0 %v776
        %v809 = vpop.f32.mrf.mxu0
        %v810 = vadd.f32 %v732, %v809
        %v811 = vpop.f32.mrf.mxu0
        %v812 = vadd.f32 %v732, %v811
        %813 = vmatmul.bf16.gmra.mxu0 %v779
        %v814 = vpop.f32.mrf.mxu0
        %v815 = vadd.f32 %v732, %v814
        %v816 = vpop.f32.mrf.mxu0
        %v817 = vadd.f32 %v732, %v816
        %818 = vdwg.mxu0
        %v819 = vpack.c.bf16 %v791, %v791
        %v820 = vpack.c.bf16 %v793, %v793
        %v821 = vpack.c.bf16 %v796, %v796
        %v822 = vpack.c.bf16 %v798, %v798
        %vm823 = vcmask 519168
        %824 = vst.msk [vmem:[%s570] sm:$0xf] %vm823, %v819
        %825 = vst.msk [vmem:[%s570 + $0x4] sm:$0xf] %vm823, %v820
        %826 = vst.msk [vmem:[%s570 + $0x8] sm:$0xf] %vm823, %v821
        %827 = vst.msk [vmem:[%s570 + $0xc] sm:$0xf] %vm823, %v822
        %v828 = vpack.c.bf16 %v810, %v791
        %v829 = vpack.c.bf16 %v812, %v793
        %v830 = vpack.c.bf16 %v815, %v796
        %v831 = vpack.c.bf16 %v817, %v798
        %836 = vrot.lane.b32.xlu0 %v828, 64
        %v837 = vpop.permute.xlu0 %836
        %838 = vrot.lane.b32.xlu0 %v829, 64
        %v839 = vpop.permute.xlu0 %838
        %840 = vrot.lane.b32.xlu0 %v830, 64
        %v841 = vpop.permute.xlu0 %840
        %842 = vrot.lane.b32.xlu0 %v831, 64
        %v843 = vpop.permute.xlu0 %842
        %v844 = vrot.slane %v837, 4
        %v845 = vrot.slane %v839, 4
        %v846 = vrot.slane %v841, 4
        %v847 = vrot.slane %v843, 4
        %vm848 = vcmask 523264
        %v849 = vsel %vm848, %v837, %v844
        %v850 = vsel %vm848, %v839, %v845
        %v851 = vsel %vm848, %v841, %v846
        %v852 = vsel %vm848, %v843, %v847
        %857 = vst [vmem:[%s577] sm:$0xf] %v849
        %858 = vst [vmem:[%s577 + $0x4] sm:$0xf] %v850
        %859 = vst [vmem:[%s577 + $0x8] sm:$0xf] %v851
        %860 = vst [vmem:[%s577 + $0xc] sm:$0xf] %v852
        %v861 = vpack.c.bf16 %v604, %v603
        %v862 = vpack.c.bf16 %v606, %v605
        %v863 = vld [vmem:[%s5] sm:$0xf]
        %v864 = vld [vmem:[%s5 + $0x4] sm:$0xf]
        %v865 = vld [vmem:[%s5 + $0x8] sm:$0xf]
        %v866 = vld [vmem:[%s5 + $0xc] sm:$0xf]
        %v867 = vld [vmem:[%s5 + $0x10] sm:$0xf]
        %v868 = vld [vmem:[%s5 + $0x14] sm:$0xf]
        %v869 = vld [vmem:[%s5 + $0x18] sm:$0xf]
        %v870 = vld [vmem:[%s5 + $0x1c] sm:$0xf]
        %v871 = vld [vmem:[%s6] sm:$0x1]
        %v873 = vperm.slane %v871, 0
        %v883 = vunpack.c.l.b16 %v863
        %v884 = vunpack.c.l.b16 %v864
        %v885 = vunpack.c.l.b16 %v865
        %v886 = vunpack.c.l.b16 %v866
        %v887 = vunpack.c.l.b16 %v867
        %v888 = vunpack.c.l.b16 %v868
        %v889 = vunpack.c.l.b16 %v869
        %v890 = vunpack.c.l.b16 %v870
        %v891 = vpack.c.b16 %v884, %v883
        %v892 = vpack.c.b16 %v886, %v885
        %v893 = vpack.c.b16 %v888, %v887
        %v894 = vpack.c.b16 %v890, %v889
        %v900 = vsel %vm612, %v861, 0
        %v903 = vsel %vm612, %v862, 0
        %905 = vmatpush.bf16.msra.mxu0 0
        %906 = vmatpush.bf16.msra.mxu0 0
        %907 = vmatpush.bf16.msra.mxu0 0
        %908 = vmatpush.bf16.msra.mxu0 0
        %909 = vmatpush.bf16.msra.mxu0 %v894
        %910 = vmatpush.bf16.msra.mxu0 %v893
        %911 = vmatpush.bf16.msra.mxu0 %v892
        %912 = vmatpush.bf16.msra.mxu0 %v891
        %913 = vmatmul.bf16.gmra.mxu0 %v900
        %v914 = vpop.f32.mrf.mxu0
        %v915 = vadd.f32 %v873, %v914
        %v916 = vpop.f32.mrf.mxu0
        %v917 = vadd.f32 %v873, %v916
        %918 = vmatmul.bf16.gmra.mxu0 %v903
        %v919 = vpop.f32.mrf.mxu0
        %v920 = vadd.f32 %v873, %v919
        %v921 = vpop.f32.mrf.mxu0
        %v922 = vadd.f32 %v873, %v921
        %923 = vdwg.mxu0
        %v924 = vpack.c.bf16 %v915, %v915
        %v925 = vpack.c.bf16 %v917, %v917
        %v926 = vpack.c.bf16 %v920, %v920
        %v927 = vpack.c.bf16 %v922, %v922
        %928 = vst.msk [vmem:[%s584] sm:$0xf] %vm823, %v924
        %929 = vst.msk [vmem:[%s584 + $0x4] sm:$0xf] %vm823, %v925
        %930 = vst.msk [vmem:[%s584 + $0x8] sm:$0xf] %vm823, %v926
        %931 = vst.msk [vmem:[%s584 + $0xc] sm:$0xf] %vm823, %v927
        %v932 = vpack.c.bf16 %v608, %v607
        %v933 = vpack.c.bf16 %v610, %v609
        %v934 = vld [vmem:[#allocation10] sm:$0xf]
        %v935 = vld [vmem:[#allocation10 + $0x4] sm:$0xf]
        %v936 = vld [vmem:[#allocation10 + $0x8] sm:$0xf]
        %v937 = vld [vmem:[#allocation10 + $0xc] sm:$0xf]
        %v938 = vld [vmem:[#allocation10 + $0x10] sm:$0xf]
        %v939 = vld [vmem:[#allocation10 + $0x14] sm:$0xf]
        %v940 = vld [vmem:[#allocation10 + $0x18] sm:$0xf]
        %v941 = vld [vmem:[#allocation10 + $0x1c] sm:$0xf]
        %v942 = vld [vmem:[%s8] sm:$0x1]
        %v944 = vperm.slane %v942, 0
        %v954 = vunpack.c.l.b16 %v934
        %v955 = vunpack.c.l.b16 %v935
        %v956 = vunpack.c.l.b16 %v936
        %v957 = vunpack.c.l.b16 %v937
        %v958 = vunpack.c.l.b16 %v938
        %v959 = vunpack.c.l.b16 %v939
        %v960 = vunpack.c.l.b16 %v940
        %v961 = vunpack.c.l.b16 %v941
        %v962 = vpack.c.b16 %v955, %v954
        %v963 = vpack.c.b16 %v957, %v956
        %v964 = vpack.c.b16 %v959, %v958
        %v965 = vpack.c.b16 %v961, %v960
        %v971 = vsel %vm612, %v932, 0
        %v974 = vsel %vm612, %v933, 0
        %976 = vmatpush.bf16.msra.mxu0 0
        %977 = vmatpush.bf16.msra.mxu0 0
        %978 = vmatpush.bf16.msra.mxu0 0
        %979 = vmatpush.bf16.msra.mxu0 0
        %980 = vmatpush.bf16.msra.mxu0 %v965
        %981 = vmatpush.bf16.msra.mxu0 %v964
        %982 = vmatpush.bf16.msra.mxu0 %v963
        %983 = vmatpush.bf16.msra.mxu0 %v962
        %984 = vmatmul.bf16.gmra.mxu0 %v971
        %v985 = vpop.f32.mrf.mxu0
        %v986 = vadd.f32 %v944, %v985
        %v987 = vpop.f32.mrf.mxu0
        %v988 = vadd.f32 %v944, %v987
        %989 = vmatmul.bf16.gmra.mxu0 %v974
        %v990 = vpop.f32.mrf.mxu0
        %v991 = vadd.f32 %v944, %v990
        %v992 = vpop.f32.mrf.mxu0
        %v993 = vadd.f32 %v944, %v992
        %994 = vdwg.mxu0
        %v995 = vpack.c.bf16 %v986, %v986
        %v996 = vpack.c.bf16 %v988, %v988
        %v997 = vpack.c.bf16 %v991, %v991
        %v998 = vpack.c.bf16 %v993, %v993
        %999 = vst [vmem:[%s591] sm:$0xf] %v995
        %1000 = vst [vmem:[%s591 + $0x4] sm:$0xf] %v996
        %1001 = vst [vmem:[%s591 + $0x8] sm:$0xf] %v997
        %1002 = vst [vmem:[%s591 + $0xc] sm:$0xf] %v998
        %s1003 = sand.u32 %s270, 1
        %s1004 = scalar_lea.sflag [#allocation4], %s1003
        %s1005 = sand.u32 %s270, 1
        %s1006 = smul.addr %s1005, 16
        %s1007 = scalar_lea.vmem [#allocation11], %s1006
        %s1008 = sand.u32 %s40, 1
        %s1009 = scalar_lea.sflag [#allocation13], %s1008
        %s1010 = sand.u32 %s298, 1
        %s1011 = smul.addr %s1010, 16
        %s1012 = scalar_lea.vmem [#allocation12], %s1011
        %s1013 = sand.u32 %s40, 1
        %s1014 = scalar_lea.sflag [#allocation13], %s1013
        %s1015 = sand.u32 %s326, 1
        %s1016 = smul.addr %s1015, 16
        %s1017 = scalar_lea.vmem [#allocation14], %s1016
        %s1018 = sand.u32 %s354, 1
        %s1019 = scalar_lea.sflag [#allocation16], %s1018
        %s1020 = sand.u32 %s354, 1
        %s1021 = smul.addr %s1020, 16
        %s1022 = scalar_lea.vmem [#allocation15], %s1021
        // Predicated region
        $region77: #{tpu_custom_call.1} parent=55 // pred_check
          %p1023 = pneg %p280
        $region78: #{tpu_custom_call.1} parent=55 // pred_check_branch
          %1025 = sbr.rel (%p1023) target = $region80
        $region79: #{tpu_custom_call.1} parent=55 // pred_region
          %s1026 = smul.u32 4, %s45
          %1028 = vsyncadd %s1004, 0
          %s1029 = smul.addr %s44, 8
          %s1030 = sadd.s32 %s1026, %s1029
          %s1031 = smul.addr %s1030, 4
          %s1032 = scalar_lea.hbm %s9, %s1031
          %s1033 = sshll.u32 %s1007, 4
          %s1034 = int_to_ptr.vmem [resolvable:$true] %s1033
          %s1035 = sshll.u32 %s1032, 4
          %s1036 = int_to_ptr.hbm [resolvable:$true] %s1035
          %1041 = dma.vmem_to_hbm [thread:$0]  %s1034, 256, %s1036, %s1004, 64, 64, 4
        $region80: #{tpu_custom_call.1} parent=55 // pred_fallthru
          _
        // Predicated region
        $region81: #{tpu_custom_call.1} parent=55 // pred_check
          %p1042 = pneg %p308
        $region82: #{tpu_custom_call.1} parent=55 // pred_check_branch
          %1044 = sbr.rel (%p1042) target = $region84
        $region83: #{tpu_custom_call.1} parent=55 // pred_region
          %s1045 = smul.u32 4, %s45
          %1047 = vsyncadd %s1009, 0
          %s1048 = smul.addr %s44, 8
          %s1049 = sadd.s32 %s1045, %s1048
          %s1050 = smul.addr %s1049, 4
          %s1051 = scalar_lea.hbm %s10, %s1050
          %s1052 = sshll.u32 %s1012, 4
          %s1053 = int_to_ptr.vmem [resolvable:$true] %s1052
          %s1054 = sshll.u32 %s1051, 4
          %s1055 = int_to_ptr.hbm [resolvable:$true] %s1054
          %1060 = dma.vmem_to_hbm [thread:$0]  %s1053, 256, %s1055, %s1009, 64, 64, 4
        $region84: #{tpu_custom_call.1} parent=55 // pred_fallthru
          _
        // Predicated region
        $region85: #{tpu_custom_call.1} parent=55 // pred_check
          %p1061 = pneg %p336
        $region86: #{tpu_custom_call.1} parent=55 // pred_check_branch
          %1063 = sbr.rel (%p1061) target = $region88
        $region87: #{tpu_custom_call.1} parent=55 // pred_region
          %s1064 = smul.u32 4, %s45
          %1066 = vsyncadd %s1014, 0
          %s1067 = smul.addr %s44, 8
          %s1068 = sadd.s32 %s1064, %s1067
          %s1069 = smul.addr %s1068, 4
          %s1070 = scalar_lea.hbm %s11, %s1069
          %s1071 = sshll.u32 %s1017, 4
          %s1072 = int_to_ptr.vmem [resolvable:$true] %s1071
          %s1073 = sshll.u32 %s1070, 4
          %s1074 = int_to_ptr.hbm [resolvable:$true] %s1073
          %1079 = dma.vmem_to_hbm [thread:$0]  %s1072, 256, %s1074, %s1014, 64, 64, 4
        $region88: #{tpu_custom_call.1} parent=55 // pred_fallthru
          _
        // Predicated region
        $region89: #{tpu_custom_call.1} parent=55 // pred_check
          %p1080 = pneg %p364
        $region90: #{tpu_custom_call.1} parent=55 // pred_check_branch
          %1082 = sbr.rel (%p1080) target = $region92
        $region91: #{tpu_custom_call.1} parent=55 // pred_region
          %s1083 = smul.u32 4, %s45
          %1085 = vsyncadd %s1019, 0
          %s1086 = smul.addr %s44, 8
          %s1087 = sadd.s32 %s1083, %s1086
          %s1088 = smul.addr %s1087, 4
          %s1089 = scalar_lea.hbm %s12, %s1088
          %s1090 = sshll.u32 %s1022, 4
          %s1091 = int_to_ptr.vmem [resolvable:$true] %s1090
          %s1092 = sshll.u32 %s1089, 4
          %s1093 = int_to_ptr.hbm [resolvable:$true] %s1092
          %1098 = dma.vmem_to_hbm [thread:$0]  %s1091, 256, %s1093, %s1019, 64, 64, 4
        $region92: #{tpu_custom_call.1} parent=55 // pred_fallthru
          _
      $region56: #{tpu_custom_call.1} parent=5 // pred_fallthru
        _
      %p1099 = scmp.le.s32.totalorder 2, %s35
      // Predicated region
      $region93: #{tpu_custom_call.1} parent=5 // pred_check
        %p1100 = pneg %p1099
      $region94: #{tpu_custom_call.1} parent=5 // pred_check_branch
        %1102 = sbr.rel (%p1100) target = $region96
      $region95: #{tpu_custom_call.1} parent=5 // pred_region
        %s1103 = ssub.s32 %s35, 2
        // Predicated region
        $region97: #{tpu_custom_call.1} parent=95 // pred_check
          %p1104 = pneg %p286
        $region98: #{tpu_custom_call.1} parent=95 // pred_check_branch
          %1106 = sbr.rel (%p1104) target = $region100
        $region99: #{tpu_custom_call.1} parent=95 // pred_region
          %s1107 = sand.u32 %s271, 1
          %s1108 = scalar_lea.sflag [#allocation4], %s1107
          %s1109 = sand.u32 %s271, 1
          %s1110 = smul.addr %s1109, 16
          %s1111 = scalar_lea.vmem [#allocation11], %s1110
          %1113 = dma.done %s1108, 256
        $region100: #{tpu_custom_call.1} parent=95 // pred_fallthru
          _
        // Predicated region
        $region101: #{tpu_custom_call.1} parent=95 // pred_check
          %p1114 = pneg %p314
        $region102: #{tpu_custom_call.1} parent=95 // pred_check_branch
          %1116 = sbr.rel (%p1114) target = $region104
        $region103: #{tpu_custom_call.1} parent=95 // pred_region
          %s1117 = sand.u32 %s41, 1
          %s1118 = scalar_lea.sflag [#allocation13], %s1117
          %s1119 = sand.u32 %s299, 1
          %s1120 = smul.addr %s1119, 16
          %s1121 = scalar_lea.vmem [#allocation12], %s1120
          %1123 = dma.done %s1118, 256
        $region104: #{tpu_custom_call.1} parent=95 // pred_fallthru
          _
        // Predicated region
        $region105: #{tpu_custom_call.1} parent=95 // pred_check
          %p1124 = pneg %p342
        $region106: #{tpu_custom_call.1} parent=95 // pred_check_branch
          %1126 = sbr.rel (%p1124) target = $region108
        $region107: #{tpu_custom_call.1} parent=95 // pred_region
          %s1127 = sand.u32 %s41, 1
          %s1128 = scalar_lea.sflag [#allocation13], %s1127
          %s1129 = sand.u32 %s327, 1
          %s1130 = smul.addr %s1129, 16
          %s1131 = scalar_lea.vmem [#allocation14], %s1130
          %1133 = dma.done %s1128, 256
        $region108: #{tpu_custom_call.1} parent=95 // pred_fallthru
          _
        // Predicated region
        $region109: #{tpu_custom_call.1} parent=95 // pred_check
          %p1134 = pneg %p370
        $region110: #{tpu_custom_call.1} parent=95 // pred_check_branch
          %1136 = sbr.rel (%p1134) target = $region112
        $region111: #{tpu_custom_call.1} parent=95 // pred_region
          %s1137 = sand.u32 %s355, 1
          %s1138 = scalar_lea.sflag [#allocation16], %s1137
          %s1139 = sand.u32 %s355, 1
          %s1140 = smul.addr %s1139, 16
          %s1141 = scalar_lea.vmem [#allocation15], %s1140
          %1143 = dma.done %s1138, 256
        $region112: #{tpu_custom_call.1} parent=95 // pred_fallthru
          _
      $region96: #{tpu_custom_call.1} parent=5 // pred_fallthru
        _
    $region6: #{tpu_custom_call.1} parent=1 // loop_footer
      %s39 = sadd.s32 1, %s35
    $region7: #{tpu_custom_call.1} parent=1 // loop_footer_branch
      %34 = sbr.rel target = $region3
    $region8: #{tpu_custom_call.1} parent=1 // loop_exit
      _
    %1144 = vsyncpa [#allocation3], 1
    %s1145 = scalar_lea.sflag [#allocation3], 1
    %1146 = vsyncpa %s1145, 1
    %1147 = vsyncpa [#allocation6], 1
    %s1148 = scalar_lea.sflag [#allocation6], 1
    %1149 = vsyncpa %s1148, 1
    %1150 = vsyncpa [#allocation9], 1
    %1151 = vsyncpa [#allocation4], 1
    %s1152 = scalar_lea.sflag [#allocation4], 1
    %1153 = vsyncpa %s1152, 1
    %1154 = vsyncpa [#allocation13], 1
    %s1155 = scalar_lea.sflag [#allocation13], 1
    %1156 = vsyncpa %s1155, 1
    %1157 = vsyncpa [#allocation16], 1
    %s1158 = scalar_lea.sflag [#allocation16], 1
    %1159 = vsyncpa %s1158, 1

</llo_original>
